<compile_context>
chip_gen: v5e
topology: v5e:2x2
jax: 0.10.0
libtpu: 0.0.40
codegen_flags: <defaults>
</compile_context>

<pallas_src>
import functools

import jax
import jax.numpy as jnp
from jax.experimental import pallas as pl
from jax.experimental.pallas import tpu as pltpu


_TAP_MATMUL_MIN_C = 128   # switch 3x3-conv strategy at this channel count


def _round_up(x, m):
    return ((x + m - 1) // m) * m


def _pick_batch_block(B):
    # Prefer >= 2 batch blocks so the "parallel" grid axis can shard across
    # v7x's two TensorCores and the pipeline has steps to overlap.
    for nb in range(min(B, 8), 0, -1):
        if B % nb == 0 and B // nb >= 2:
            return nb
    return 1


@functools.lru_cache(maxsize=None)
def _vmem_budget():
    """(vmem_limit_bytes, per-step temporaries budget) for the detected chip."""
    try:
        cap = int(pltpu.get_tpu_info().vmem_capacity_bytes)
    except Exception:
        cap = 64 * 1024 * 1024      # assume the smallest (v7x per-core VMEM)
    limit = min((cap * 3) // 4, 64 * 1024 * 1024)
    return limit, limit // 2


def _estimate_step_bytes(nb, th, H, W, C, Ch, P, in_item, out_item):
    """Rough per-grid-step VMEM footprint for row tile `th`."""
    n = nb * th * W
    x_block = 2 * nb * (H + 2) * (W + 2) * C * in_item   # (double-buffered) input
    taps = 9 * n * C * in_item                           # tap loads / im2col patch
    acc = n * Ch * 4                                     # f32 accumulator / hidden
    hid_mm = n * Ch * in_item                            # hidden cast for 2nd matmul
    out_f32 = n * P * 4                                  # f32 result before store
    out_blk = 2 * n * P * out_item                       # double-buffered out block
    weights = (9 * C * Ch + Ch * P) * in_item + (Ch + P) * 4
    return x_block + taps + acc + hid_mm + out_f32 + out_blk + weights


def _pick_row_tile(H, W, C, nb, Ch, P, in_item, out_item, budget, want_multi):
    """Largest divisor of H whose per-step footprint fits the VMEM budget."""
    best = 1
    for th in range(1, H + 1):
        if H % th != 0:
            continue
        if want_multi and th == H and H > 1:
            continue               # force >= 2 grid steps when batch gives only 1
        if _estimate_step_bytes(nb, th, H, W, C, Ch, P, in_item, out_item) <= budget:
            best = max(best, th)
    return best


def _head_level_kernel(x_ref, w1_ref, b1_ref, w2_ref, b2_ref, o_ref,
                       *, W, C, NB, TH):
    """One (batch block, row tile) of one FPN level, fully fused.

    x_ref : (NB, H+2, W+2, C)  zero-padded NHWC activations (compute dtype),
                               resident across the row-tile grid axis.
    w1_ref: (9*C, Ch)          3x3 weights, row = (ky*3+kx)*C + c, Ch = pad(2C,128)
    b1_ref: (1, Ch)   f32      (zero in padded columns)
    w2_ref: (Ch, P)            1x1 weights, P = pad(pdim, 128)
    b2_ref: (1, P)    f32
    o_ref : (NB, TH, W, P)     lane-dense output tile.
    """
    mm_dtype = w1_ref.dtype
    ch = w1_ref.shape[1]
    n = NB * TH * W

    r = pl.program_id(1)
    row0 = pl.multiple_of(r * TH, TH)   # top row of this tile in padded coords

    def tap(ky, kx):
        # (NB, TH, W, C) window of the resident padded block; real halo rows
        # come straight from the zero-padded HBM copy (no in-kernel concat).
        t = x_ref[:, pl.ds(row0 + ky, TH), pl.ds(kx, W), :]
        return t.reshape(n, C)

    if C >= _TAP_MATMUL_MIN_C:
        # 9 accumulating K=C matmuls: each tap already fills the MXU K dim and
        # the f32 value accumulator avoids materializing the (n, 9C) patch.
        acc = jnp.zeros((n, ch), jnp.float32)
        for ky in range(3):
            for kx in range(3):
                k0 = (3 * ky + kx) * C
                acc = acc + jnp.dot(tap(ky, kx), w1_ref[k0:k0 + C, :],
                                    preferred_element_type=jnp.float32)
    else:
        # Tiny C: a single fused (n, 9C) im2col matmul gives 9x better K fill.
        patch = jnp.concatenate(
            [tap(ky, kx) for ky in range(3) for kx in range(3)], axis=-1)
        acc = jnp.dot(patch, w1_ref[...], preferred_element_type=jnp.float32)

    hidden = jnp.maximum(acc + b1_ref[...], 0.0)            # f32 bias + ReLU
    out = jnp.dot(hidden.astype(mm_dtype), w2_ref[...],
                  preferred_element_type=jnp.float32)
    out = out + b2_ref[...]
    o_ref[...] = out.reshape(o_ref.shape).astype(o_ref.dtype)


def head_level_pallas(x_padded, w1, b1, w2, b2, *, out_dtype=jnp.float32,
                      batch_block=None, row_tile=None):
    """Run one head level.

    x_padded: (B, H+2, W+2, C) zero-padded NHWC activations (f32 or bf16).
    Returns (B, H*W, P) in out_dtype, P = pad(pdim, 128).
    """
    B, Hp2, Wp2, C = x_padded.shape
    H, W = Hp2 - 2, Wp2 - 2
    Ch = w1.shape[1]
    P = w2.shape[1]

    nb = batch_block if batch_block is not None else _pick_batch_block(B)
    assert B % nb == 0, (B, nb)

    vmem_limit, vmem_tile_budget = _vmem_budget()
    if row_tile is None:
        th = _pick_row_tile(H, W, C, nb, Ch, P,
                            in_item=x_padded.dtype.itemsize,
                            out_item=jnp.dtype(out_dtype).itemsize,
                            budget=vmem_tile_budget,
                            want_multi=(B // nb) < 2)
    else:
        th = row_tile
    assert H % th == 0, (H, th)

    kernel = functools.partial(_head_level_kernel, W=W, C=C, NB=nb, TH=th)

    out = pl.pallas_call(
        kernel,
        out_shape=jax.ShapeDtypeStruct((B, H, W, P), out_dtype),
        grid_spec=pltpu.PrefetchScalarGridSpec(
            num_scalar_prefetch=0,
            grid=(B // nb, H // th),
            in_specs=[
                # Padded activations: whole level per batch block, resident
                # across the row-tile axis (index map ignores r).
                pl.BlockSpec((nb, H + 2, W + 2, C), lambda b, r: (b, 0, 0, 0)),
                pl.BlockSpec(w1.shape, lambda b, r: (0, 0)),
                pl.BlockSpec(b1.shape, lambda b, r: (0, 0)),
                pl.BlockSpec(w2.shape, lambda b, r: (0, 0)),
                pl.BlockSpec(b2.shape, lambda b, r: (0, 0)),
            ],
            out_specs=pl.BlockSpec((nb, th, W, P), lambda b, r: (b, r, 0, 0)),
        ),
        compiler_params=pltpu.CompilerParams(
            dimension_semantics=("parallel", "parallel"),
            vmem_limit_bytes=vmem_limit),
    )(x_padded, w1, b1, w2, b2)
    return out.reshape(B, H * W, P)


def prepare_head_params(torch_params, compute_dtype=jnp.float32):
    """Convert + pad PyTorch-layout weights ONCE (outside the forward).

    torch_params: list of
        (w1 (2C, C, 3, 3) OIHW, b1 (2C,), w2 (pdim, 2C, 1, 1) OIHW, b2 (pdim,))
    Returns per level: (w1 (9C, Ch), b1 (1, Ch) f32, w2 (Ch, P), b2 (1, P) f32,
    pdim) with Ch = pad(2C, 128), P = pad(pdim, 128).  The zero hidden columns
    stay zero through ReLU and multiply zero w2 rows, so results are unchanged.
    bf16 compute_dtype is recommended on all TPU generations (incl. v5e).
    """
    prepared = []
    for w1, b1, w2, b2 in torch_params:
        out_c, C, kh, kw = w1.shape
        assert (kh, kw) == (3, 3)
        pdim = w2.shape[0]
        Ch = _round_up(out_c, 128)
        P = _round_up(pdim, 128)
        # OIHW -> (ky, kx, C, 2C) -> (9C, 2C), tap-major rows.
        w1_taps = jnp.transpose(w1, (2, 3, 1, 0)).reshape(9 * C, out_c)
        w1_pad = jnp.zeros((9 * C, Ch), compute_dtype).at[:, :out_c].set(
            w1_taps.astype(compute_dtype))
        b1_pad = jnp.zeros((1, Ch), jnp.float32).at[:, :out_c].set(
            b1.reshape(1, out_c).astype(jnp.float32))
        w2_mat = jnp.transpose(w2[:, :, 0, 0], (1, 0))            # (2C, pdim)
        w2_pad = jnp.zeros((Ch, P), compute_dtype).at[:out_c, :pdim].set(
            w2_mat.astype(compute_dtype))
        b2_pad = jnp.zeros((1, P), jnp.float32).at[:, :pdim].set(
            b2.reshape(1, pdim).astype(jnp.float32))
        prepared.append((w1_pad, b1_pad, w2_pad, b2_pad, pdim))
    return prepared


def kfcos_head_forward(inputs_nchw, prepared_params, out_dtype=jnp.float32):
    """Full KFcosHead forward.

    inputs_nchw: list of (B, C_i, H_i, W_i) arrays (PyTorch layout).
    Returns (B, sum_i H_i*W_i, pdim) float32, matching
    torch.cat(res, dim=-1).permute(0, 2, 1).
    """
    outs = []
    for x, (w1, b1, w2, b2, pdim) in zip(inputs_nchw, prepared_params):
        compute_dtype = w1.dtype
        x_nhwc = jnp.transpose(x, (0, 2, 3, 1)).astype(compute_dtype)
        x_pad = jnp.pad(x_nhwc, ((0, 0), (1, 1), (1, 1), (0, 0)))
        out_p = head_level_pallas(x_pad, w1, b1, w2, b2, out_dtype=out_dtype)
        outs.append(out_p[..., :pdim].astype(jnp.float32))   # drop lane padding
    return jnp.concatenate(outs, axis=1)


def _reference_level(x_nchw, w1_oihw, b1, w2_oihw, b2):
    """Pure-JAX reference for one level, using the PyTorch weight layout."""
    y = jax.lax.conv_general_dilated(
        x_nchw, w1_oihw, window_strides=(1, 1), padding=((1, 1), (1, 1)),
        dimension_numbers=("NCHW", "OIHW", "NCHW"),
        precision=jax.lax.Precision.HIGHEST)
    y = jnp.maximum(y + b1.reshape(1, -1, 1, 1), 0.0)
    z = jax.lax.conv_general_dilated(
        y, w2_oihw, window_strides=(1, 1), padding="VALID",
        dimension_numbers=("NCHW", "OIHW", "NCHW"),
        precision=jax.lax.Precision.HIGHEST)
    z = z + b2.reshape(1, -1, 1, 1)
    return z.reshape(z.shape[0], z.shape[1], -1)     # (B, pdim, H*W), as torch


if __name__ == "__main__":
    # Small synthetic config: NUM_CLASSES=3 -> pdim = 1 + 3 + 1 + 4 = 9.
    # The third level (C=128) exercises the accumulating-tap-matmul path.
    NUM_CLASSES = 3
    pdim = 1 + NUM_CLASSES + 1 + 4
    B = 2
    in_channels_list = [4, 8, 128]
    spatial_list = [16, 8, 8]

    key = jax.random.PRNGKey(0)
    torch_params = []
    for c in in_channels_list:
        key, k1, k2, k3, k4 = jax.random.split(key, 5)
        torch_params.append((
            jax.random.normal(k1, (2 * c, c, 3, 3), jnp.float32) * 0.05,   # OIHW
            jax.random.normal(k2, (2 * c,), jnp.float32) * 0.05,
            jax.random.normal(k3, (pdim, 2 * c, 1, 1), jnp.float32) * 0.05,
            jax.random.normal(k4, (pdim,), jnp.float32) * 0.05,
        ))

    inputs = []
    for c, s in zip(in_channels_list, spatial_list):
        key, kx = jax.random.split(key)
        inputs.append(jax.random.normal(kx, (B, c, s, s), jnp.float32))    # NCHW

    # f32 operand path.
    params_f32 = prepare_head_params(torch_params, compute_dtype=jnp.float32)
    out = jax.block_until_ready(kfcos_head_forward(inputs, params_f32))

    # Pure-JAX reference (uses the torch OIHW weights directly, so the layout
    # conversion in prepare_head_params is validated too).
    ref_levels = [_reference_level(x, *p) for x, p in zip(inputs, torch_params)]
    ref = jnp.transpose(jnp.concatenate(ref_levels, axis=-1), (0, 2, 1))

    assert out.shape == (B, sum(s * s for s in spatial_list), pdim), out.shape
    assert jnp.allclose(out, ref, atol=1e-3, rtol=1e-3), \
        float(jnp.max(jnp.abs(out - ref)))

    # bf16 operand path (recommended on v5e/v6e/v7x); f32 accumulation + epilogue
    # inside the kernel; bf16 output halves HBM writeback of the padded lanes.
    params_bf16 = prepare_head_params(torch_params, compute_dtype=jnp.bfloat16)
    out_bf16 = jax.block_until_ready(
        kfcos_head_forward(inputs, params_bf16, out_dtype=jnp.bfloat16))
    assert out_bf16.shape == out.shape
    assert jnp.allclose(out_bf16, ref, atol=5e-2, rtol=5e-2), \
        float(jnp.max(jnp.abs(out_bf16 - ref)))

    print("KERNEL_OK")
</pallas_src>

<mosaic_0001>
module attributes {stable_mosaic.version = 11 : i64} {
  func.func @_head_level_kernel(%arg0: i32, %arg1: i32, %arg2: memref<1x18x18x4xf32, #tpu.memory_space<vmem>>, %arg3: memref<36x128xf32, #tpu.memory_space<vmem>>, %arg4: memref<1x128xf32, #tpu.memory_space<vmem>>, %arg5: memref<128x128xf32, #tpu.memory_space<vmem>>, %arg6: memref<1x128xf32, #tpu.memory_space<vmem>>, %arg7: memref<1x16x16x128xf32, #tpu.memory_space<vmem>>) attributes {dimension_semantics = [#tpu.dimension_semantics<parallel>, #tpu.dimension_semantics<parallel>], iteration_bounds = array<i64: 2, 1>, scalar_prefetch = 0 : i64, scratch_operands = 0 : i64, tpu.core_type = #tpu.core_type<tc>, window_params = [{transform_indices = @transform_0, window_bounds = array<i64: 1, 18, 18, 4>}, {pipeline_mode = #tpu.pipeline_mode<synchronous>, transform_indices = @transform_1, window_bounds = array<i64: 36, 128>}, {pipeline_mode = #tpu.pipeline_mode<synchronous>, transform_indices = @transform_2, window_bounds = array<i64: 1, 128>}, {pipeline_mode = #tpu.pipeline_mode<synchronous>, transform_indices = @transform_3, window_bounds = array<i64: 128, 128>}, {pipeline_mode = #tpu.pipeline_mode<synchronous>, transform_indices = @transform_4, window_bounds = array<i64: 1, 128>}, {transform_indices = @transform_5, window_bounds = array<i64: 1, 16, 16, 128>}]} {
    %c16_i32 = arith.constant 16 : i32
    %0 = arith.muli %arg1, %c16_i32 : i32
    %1 = tpu.assume_multiple %0, 16 : i32
    %c0_i32 = arith.constant 0 : i32
    %2 = arith.addi %1, %c0_i32 : i32
    %c0 = arith.constant 0 : index
    %3 = arith.index_cast %2 : i32 to index
    %c0_0 = arith.constant 0 : index
    %c0_1 = arith.constant 0 : index
    %4 = vector.load %arg2[%c0, %3, %c0_0, %c0_1] : memref<1x18x18x4xf32, #tpu.memory_space<vmem>>, vector<1x16x16x4xf32>
    %5 = vector.shape_cast %4 : vector<1x16x16x4xf32> to vector<256x4xf32>
    %c0_i32_2 = arith.constant 0 : i32
    %6 = arith.addi %1, %c0_i32_2 : i32
    %c0_3 = arith.constant 0 : index
    %7 = arith.index_cast %6 : i32 to index
    %c1 = arith.constant 1 : index
    %c0_4 = arith.constant 0 : index
    %8 = vector.load %arg2[%c0_3, %7, %c1, %c0_4] : memref<1x18x18x4xf32, #tpu.memory_space<vmem>>, vector<1x16x16x4xf32>
    %9 = vector.shape_cast %8 : vector<1x16x16x4xf32> to vector<256x4xf32>
    %c0_i32_5 = arith.constant 0 : i32
    %10 = arith.addi %1, %c0_i32_5 : i32
    %c0_6 = arith.constant 0 : index
    %11 = arith.index_cast %10 : i32 to index
    %c2 = arith.constant 2 : index
    %c0_7 = arith.constant 0 : index
    %12 = vector.load %arg2[%c0_6, %11, %c2, %c0_7] : memref<1x18x18x4xf32, #tpu.memory_space<vmem>>, vector<1x16x16x4xf32>
    %13 = vector.shape_cast %12 : vector<1x16x16x4xf32> to vector<256x4xf32>
    %c1_i32 = arith.constant 1 : i32
    %14 = arith.addi %1, %c1_i32 : i32
    %c0_8 = arith.constant 0 : index
    %15 = arith.index_cast %14 : i32 to index
    %c0_9 = arith.constant 0 : index
    %c0_10 = arith.constant 0 : index
    %16 = vector.load %arg2[%c0_8, %15, %c0_9, %c0_10] : memref<1x18x18x4xf32, #tpu.memory_space<vmem>>, vector<1x16x16x4xf32>
    %17 = vector.shape_cast %16 : vector<1x16x16x4xf32> to vector<256x4xf32>
    %c1_i32_11 = arith.constant 1 : i32
    %18 = arith.addi %1, %c1_i32_11 : i32
    %c0_12 = arith.constant 0 : index
    %19 = arith.index_cast %18 : i32 to index
    %c1_13 = arith.constant 1 : index
    %c0_14 = arith.constant 0 : index
    %20 = vector.load %arg2[%c0_12, %19, %c1_13, %c0_14] : memref<1x18x18x4xf32, #tpu.memory_space<vmem>>, vector<1x16x16x4xf32>
    %21 = vector.shape_cast %20 : vector<1x16x16x4xf32> to vector<256x4xf32>
    %c1_i32_15 = arith.constant 1 : i32
    %22 = arith.addi %1, %c1_i32_15 : i32
    %c0_16 = arith.constant 0 : index
    %23 = arith.index_cast %22 : i32 to index
    %c2_17 = arith.constant 2 : index
    %c0_18 = arith.constant 0 : index
    %24 = vector.load %arg2[%c0_16, %23, %c2_17, %c0_18] : memref<1x18x18x4xf32, #tpu.memory_space<vmem>>, vector<1x16x16x4xf32>
    %25 = vector.shape_cast %24 : vector<1x16x16x4xf32> to vector<256x4xf32>
    %c2_i32 = arith.constant 2 : i32
    %26 = arith.addi %1, %c2_i32 : i32
    %c0_19 = arith.constant 0 : index
    %27 = arith.index_cast %26 : i32 to index
    %c0_20 = arith.constant 0 : index
    %c0_21 = arith.constant 0 : index
    %28 = vector.load %arg2[%c0_19, %27, %c0_20, %c0_21] : memref<1x18x18x4xf32, #tpu.memory_space<vmem>>, vector<1x16x16x4xf32>
    %29 = vector.shape_cast %28 : vector<1x16x16x4xf32> to vector<256x4xf32>
    %c2_i32_22 = arith.constant 2 : i32
    %30 = arith.addi %1, %c2_i32_22 : i32
    %c0_23 = arith.constant 0 : index
    %31 = arith.index_cast %30 : i32 to index
    %c1_24 = arith.constant 1 : index
    %c0_25 = arith.constant 0 : index
    %32 = vector.load %arg2[%c0_23, %31, %c1_24, %c0_25] : memref<1x18x18x4xf32, #tpu.memory_space<vmem>>, vector<1x16x16x4xf32>
    %33 = vector.shape_cast %32 : vector<1x16x16x4xf32> to vector<256x4xf32>
    %c2_i32_26 = arith.constant 2 : i32
    %34 = arith.addi %1, %c2_i32_26 : i32
    %c0_27 = arith.constant 0 : index
    %35 = arith.index_cast %34 : i32 to index
    %c2_28 = arith.constant 2 : index
    %c0_29 = arith.constant 0 : index
    %36 = vector.load %arg2[%c0_27, %35, %c2_28, %c0_29] : memref<1x18x18x4xf32, #tpu.memory_space<vmem>>, vector<1x16x16x4xf32>
    %37 = vector.shape_cast %36 : vector<1x16x16x4xf32> to vector<256x4xf32>
    %38 = tpu.concatenate %5, %9, %13, %17, %21, %25, %29, %33, %37 in 1 : vector<256x4xf32>, vector<256x4xf32>, vector<256x4xf32>, vector<256x4xf32>, vector<256x4xf32>, vector<256x4xf32>, vector<256x4xf32>, vector<256x4xf32>, vector<256x4xf32> -> vector<256x36xf32>
    %c0_30 = arith.constant 0 : index
    %c0_31 = arith.constant 0 : index
    %39 = vector.load %arg3[%c0_30, %c0_31] : memref<36x128xf32, #tpu.memory_space<vmem>>, vector<36x128xf32>
    %cst = arith.constant dense<0.000000e+00> : vector<256x128xf32>
    %40 = tpu.matmul %38, %39, %cst {dimension_numbers = #tpu.dot_dimension_numbers<[1], [0], [0], [1], [0, 0, 1, 1], [], []>} : vector<256x36xf32>, vector<36x128xf32>, vector<256x128xf32> -> vector<256x128xf32>
    %c0_32 = arith.constant 0 : index
    %c0_33 = arith.constant 0 : index
    %41 = vector.load %arg4[%c0_32, %c0_33] : memref<1x128xf32, #tpu.memory_space<vmem>>, vector<1x128xf32>
    %42 = vector.broadcast %41 : vector<1x128xf32> to vector<256x128xf32>
    %43 = arith.addf %40, %42 : vector<256x128xf32>
    %cst_34 = arith.constant 0.000000e+00 : f32
    %44 = vector.broadcast %cst_34 : f32 to vector<256x128xf32>
    %45 = arith.maximumf %43, %44 : vector<256x128xf32>
    %c0_35 = arith.constant 0 : index
    %c0_36 = arith.constant 0 : index
    %46 = vector.load %arg5[%c0_35, %c0_36] : memref<128x128xf32, #tpu.memory_space<vmem>>, vector<128x128xf32>
    %cst_37 = arith.constant dense<0.000000e+00> : vector<256x128xf32>
    %47 = tpu.matmul %45, %46, %cst_37 {dimension_numbers = #tpu.dot_dimension_numbers<[1], [0], [0], [1], [0, 0, 1, 1], [], []>} : vector<256x128xf32>, vector<128x128xf32>, vector<256x128xf32> -> vector<256x128xf32>
    %c0_38 = arith.constant 0 : index
    %c0_39 = arith.constant 0 : index
    %48 = vector.load %arg6[%c0_38, %c0_39] : memref<1x128xf32, #tpu.memory_space<vmem>>, vector<1x128xf32>
    %49 = vector.broadcast %48 : vector<1x128xf32> to vector<256x128xf32>
    %50 = arith.addf %47, %49 : vector<256x128xf32>
    %51 = vector.shape_cast %50 : vector<256x128xf32> to vector<1x16x16x128xf32>
    %c0_40 = arith.constant 0 : index
    %c0_41 = arith.constant 0 : index
    %c0_42 = arith.constant 0 : index
    %c0_43 = arith.constant 0 : index
    %52 = vector.load %arg7[%c0_40, %c0_41, %c0_42, %c0_43] : memref<1x16x16x128xf32, #tpu.memory_space<vmem>>, vector<1x16x16x128xf32>
    tpu.vector_store %arg7[%c0_40, %c0_41, %c0_42, %c0_43], %51 {strides = array<i32>} : memref<1x16x16x128xf32, #tpu.memory_space<vmem>>, vector<1x16x16x128xf32>,
    return
  }
  func.func @transform_0(%arg0: i32, %arg1: i32) -> (i32, i32, i32, i32) {
    %c0_i32 = arith.constant 0 : i32
    %c0_i32_0 = arith.constant 0 : i32
    %c0_i32_1 = arith.constant 0 : i32
    %c0_i32_2 = arith.constant 0 : i32
    return %arg0, %c0_i32, %c0_i32_0, %c0_i32_1 : i32, i32, i32, i32
  }
  func.func @transform_1(%arg0: i32, %arg1: i32) -> (i32, i32) {
    %c0_i32 = arith.constant 0 : i32
    %c0_i32_0 = arith.constant 0 : i32
    %c0_i32_1 = arith.constant 0 : i32
    return %c0_i32, %c0_i32_0 : i32, i32
  }
  func.func @transform_2(%arg0: i32, %arg1: i32) -> (i32, i32) {
    %c0_i32 = arith.constant 0 : i32
    %c0_i32_0 = arith.constant 0 : i32
    %c0_i32_1 = arith.constant 0 : i32
    return %c0_i32, %c0_i32_0 : i32, i32
  }
  func.func @transform_3(%arg0: i32, %arg1: i32) -> (i32, i32) {
    %c0_i32 = arith.constant 0 : i32
    %c0_i32_0 = arith.constant 0 : i32
    %c0_i32_1 = arith.constant 0 : i32
    return %c0_i32, %c0_i32_0 : i32, i32
  }
  func.func @transform_4(%arg0: i32, %arg1: i32) -> (i32, i32) {
    %c0_i32 = arith.constant 0 : i32
    %c0_i32_0 = arith.constant 0 : i32
    %c0_i32_1 = arith.constant 0 : i32
    return %c0_i32, %c0_i32_0 : i32, i32
  }
  func.func @transform_5(%arg0: i32, %arg1: i32) -> (i32, i32, i32, i32) {
    %c0_i32 = arith.constant 0 : i32
    %c0_i32_0 = arith.constant 0 : i32
    %c0_i32_1 = arith.constant 0 : i32
    return %arg0, %arg1, %c0_i32, %c0_i32_0 : i32, i32, i32, i32
  }
}

</mosaic_0001>

<llo_original>
// kernel: tpu_custom_call.1
$region0: #{tpu_custom_call.1}
  #allocation0 [shape = 'u32[]', space=smem, size = 0x4, offset = 0x4, fixed_abs, tag = 'smem constant byte address 0x4 - core index']
  #allocation1 [shape = 'u32[72,128]{1,0:T(1,128)}', space=vmem, size = 0x9000, scoped, tag = 'internal scratch']
  %s0 = inlined_call_operand.vmem [shape: f32[2,18,18,4], index: 0, kind: input, shape index: {}]
  %s1 = inlined_call_operand.vmem [shape: f32[36,128], index: 1, kind: input, shape index: {}]
  %s2 = inlined_call_operand.vmem [shape: f32[1,128], index: 2, kind: input, shape index: {}]
  %s3 = inlined_call_operand.vmem [shape: f32[128,128], index: 3, kind: input, shape index: {}]
  %s4 = inlined_call_operand.vmem [shape: f32[1,128], index: 4, kind: input, shape index: {}]
  %s5 = inlined_call_operand.hbm [shape: f32[2,16,16,128], index: 5, kind: output, shape index: {}]
  %s6 = sld [smem:[#allocation0]]
  $region53: #{tpu_custom_call.1} parent=0
    _
  %s8 = ssub.s32 1, %s6
  %s9 = scalar_select 0, %s8, %s6
  $region1: #{tpu_custom_call.1} parent=0
    #allocation2 [shape = 'u8[262144]{0}', space=vmem, size = 0x40000, scoped, tag = 'output window, operand 0']
    #allocation3 [shape = 's32[2]{0}', space=sflag, size = 0x8, scoped, tag = 'scoped memory for tpu_custom_call.1']
    %10 = vsyncpa [#allocation3], 0
    %s11 = scalar_lea.sflag [#allocation3], 1
    %12 = vsyncpa %s11, 0
    loop: start=0, step=1, limit=4
    $region2: #{tpu_custom_call.1} parent=1 // loop_pre_header
      _
    $region3: #{tpu_custom_call.1} parent=1 // loop_header
      %s14 = sphi 0, %s18
      %p15 = scmp.ge.s32.totalorder %s14, 4
      %s21 = sphi 0, %s33
      %s22 = sphi 0, %s29
      %s23 = sphi 0, %s21
      %s24 = sphi 0, %s22
      %s25 = sphi 0, %s23
      %s26 = sphi 0, %s24
      %s36 = sphi 0, %s38
      %s39 = sphi 0, %s36
      %s40 = sphi 0, %s39
      %s56 = sphi 0, %s40
      %s60 = sphi 0, %s60
      %s62 = sphi 0, %s60
      %s63 = sphi 0, %s62
      %s77 = sphi 0, %s63
      %s81 = sphi 0, %s81
      %s83 = sphi 0, %s81
      %s84 = sphi 0, %s83
      %s98 = sphi 0, %s84
      %s102 = sphi 0, %s102
      %s104 = sphi 0, %s102
      %s105 = sphi 0, %s104
      %s119 = sphi 0, %s105
      %s123 = sphi 0, %s123
      %s125 = sphi 0, %s123
      %s126 = sphi 0, %s125
      %s140 = sphi 0, %s126
      %s148 = sphi 0, %s150
      %s151 = sphi 0, %s148
      %s152 = sphi 0, %s151
      %s168 = sphi 0, %s152
    $region4: #{tpu_custom_call.1} parent=1 // loop_header_branch
      %17 = sbr.rel (%p15) target = $region8
    $region5: #{tpu_custom_call.1} parent=1 // loop_body
      %s19 = ssub.s32 %s14, 1
      %s20 = ssub.s32 %s14, 2
      %s27 = sadd.s32 1, %s22
      %p28 = scmp.ge.s32.totalorder %s27, 1
      %s29 = scalar_select %p28, 0, %s27
      %s30 = sadd.s32 1, %s21
      %s31 = scalar_select %p28, %s30, %s21
      %p32 = scmp.ge.s32.totalorder %s31, 2
      %s33 = scalar_select %p32, 0, %s31
      %s34 = ssub.s32 %s21, %s33
      %p35 = scmp.eq.s32.totalorder %s34, 0
      %s37 = sadd.s32 %s36, 1
      %s38 = scalar_select %p35, %s36, %s37
      %p41 = pneg %p35
      %p42 = scmp.eq.s32.totalorder %s14, 1
      %p43 = por %p41, %p42
      %p44 = scmp.ne.s32.totalorder %s36, %s39
      %p45 = scmp.eq.s32.totalorder %s14, 0
      %p46 = por %p44, %p45
      %p47 = scmp.ne.s32.totalorder %s36, %s39
      %p48 = scmp.eq.s32.totalorder %s19, 1
      %p49 = por %p47, %p48
      %p50 = scmp.ne.s32.totalorder %s39, %s40
      %p51 = scmp.eq.s32.totalorder %s19, 0
      %p52 = por %p50, %p51
      %p53 = scmp.ne.s32.totalorder %s39, %s40
      %p54 = scmp.eq.s32.totalorder %s20, 1
      %p55 = por %p53, %p54
      %p57 = scmp.ne.s32.totalorder %s40, %s56
      %p58 = scmp.eq.s32.totalorder %s20, 0
      %p59 = por %p57, %p58
      %s61 = sadd.s32 %s60, 1
      %p64 = scmp.eq.s32.totalorder %s14, 1
      %p65 = scmp.ne.s32.totalorder %s60, %s62
      %p66 = scmp.eq.s32.totalorder %s14, 0
      %p67 = por %p65, %p66
      %p68 = scmp.ne.s32.totalorder %s60, %s62
      %p69 = scmp.eq.s32.totalorder %s19, 1
      %p70 = por %p68, %p69
      %p71 = scmp.ne.s32.totalorder %s62, %s63
      %p72 = scmp.eq.s32.totalorder %s19, 0
      %p73 = por %p71, %p72
      %p74 = scmp.ne.s32.totalorder %s62, %s63
      %p75 = scmp.eq.s32.totalorder %s20, 1
      %p76 = por %p74, %p75
      %p78 = scmp.ne.s32.totalorder %s63, %s77
      %p79 = scmp.eq.s32.totalorder %s20, 0
      %p80 = por %p78, %p79
      %s82 = sadd.s32 %s81, 1
      %p85 = scmp.eq.s32.totalorder %s14, 1
      %p86 = scmp.ne.s32.totalorder %s81, %s83
      %p87 = scmp.eq.s32.totalorder %s14, 0
      %p88 = por %p86, %p87
      %p89 = scmp.ne.s32.totalorder %s81, %s83
      %p90 = scmp.eq.s32.totalorder %s19, 1
      %p91 = por %p89, %p90
      %p92 = scmp.ne.s32.totalorder %s83, %s84
      %p93 = scmp.eq.s32.totalorder %s19, 0
      %p94 = por %p92, %p93
      %p95 = scmp.ne.s32.totalorder %s83, %s84
      %p96 = scmp.eq.s32.totalorder %s20, 1
      %p97 = por %p95, %p96
      %p99 = scmp.ne.s32.totalorder %s84, %s98
      %p100 = scmp.eq.s32.totalorder %s20, 0
      %p101 = por %p99, %p100
      %s103 = sadd.s32 %s102, 1
      %p106 = scmp.eq.s32.totalorder %s14, 1
      %p107 = scmp.ne.s32.totalorder %s102, %s104
      %p108 = scmp.eq.s32.totalorder %s14, 0
      %p109 = por %p107, %p108
      %p110 = scmp.ne.s32.totalorder %s102, %s104
      %p111 = scmp.eq.s32.totalorder %s19, 1
      %p112 = por %p110, %p111
      %p113 = scmp.ne.s32.totalorder %s104, %s105
      %p114 = scmp.eq.s32.totalorder %s19, 0
      %p115 = por %p113, %p114
      %p116 = scmp.ne.s32.totalorder %s104, %s105
      %p117 = scmp.eq.s32.totalorder %s20, 1
      %p118 = por %p116, %p117
      %p120 = scmp.ne.s32.totalorder %s105, %s119
      %p121 = scmp.eq.s32.totalorder %s20, 0
      %p122 = por %p120, %p121
      %s124 = sadd.s32 %s123, 1
      %p127 = scmp.eq.s32.totalorder %s14, 1
      %p128 = scmp.ne.s32.totalorder %s123, %s125
      %p129 = scmp.eq.s32.totalorder %s14, 0
      %p130 = por %p128, %p129
      %p131 = scmp.ne.s32.totalorder %s123, %s125
      %p132 = scmp.eq.s32.totalorder %s19, 1
      %p133 = por %p131, %p132
      %p134 = scmp.ne.s32.totalorder %s125, %s126
      %p135 = scmp.eq.s32.totalorder %s19, 0
      %p136 = por %p134, %p135
      %p137 = scmp.ne.s32.totalorder %s125, %s126
      %p138 = scmp.eq.s32.totalorder %s20, 1
      %p139 = por %p137, %p138
      %p141 = scmp.ne.s32.totalorder %s126, %s140
      %p142 = scmp.eq.s32.totalorder %s20, 0
      %p143 = por %p141, %p142
      %s144 = ssub.s32 %s21, %s33
      %s145 = ssub.s32 %s22, %s29
      %s146 = sor.u32 %s144, %s145
      %p147 = scmp.eq.s32.totalorder %s146, 0
      %s149 = sadd.s32 %s148, 1
      %s150 = scalar_select %p147, %s148, %s149
      %p153 = pneg %p147
      %p154 = scmp.eq.s32.totalorder %s14, 1
      %p155 = por %p153, %p154
      %p156 = scmp.ne.s32.totalorder %s148, %s151
      %p157 = scmp.eq.s32.totalorder %s14, 0
      %p158 = por %p156, %p157
      %p159 = scmp.ne.s32.totalorder %s148, %s151
      %p160 = scmp.eq.s32.totalorder %s19, 1
      %p161 = por %p159, %p160
      %p162 = scmp.ne.s32.totalorder %s151, %s152
      %p163 = scmp.eq.s32.totalorder %s19, 0
      %p164 = por %p162, %p163
      %p165 = scmp.ne.s32.totalorder %s151, %s152
      %p166 = scmp.eq.s32.totalorder %s20, 1
      %p167 = por %p165, %p166
      %p169 = scmp.ne.s32.totalorder %s152, %s168
      %p170 = scmp.eq.s32.totalorder %s20, 0
      %p171 = por %p169, %p170
      %p172 = scmp.le.s32.totalorder 1, %s14
      %p173 = scmp.lt.s32.totalorder %s14, 3
      %p174 = pnand %p172, %p173
      %p175 = pneg %p174
      // Predicated region
      $region9: #{tpu_custom_call.1} parent=5 // pred_check
        _
      $region10: #{tpu_custom_call.1} parent=5 // pred_check_branch
        %177 = sbr.rel (%p174) target = $region12
      $region11: #{tpu_custom_call.1} parent=5 // pred_region
        %s178 = ssub.s32 %s14, 1
        // Predicated region
        $region13: #{tpu_custom_call.1} parent=11 // pred_check
          %p179 = pneg %p73
        $region14: #{tpu_custom_call.1} parent=11 // pred_check_branch
          %181 = sbr.rel (%p179) target = $region16
        $region15: #{tpu_custom_call.1} parent=11 // pred_region
          _
        $region16: #{tpu_custom_call.1} parent=11 // pred_fallthru
          _
        // Predicated region
        $region17: #{tpu_custom_call.1} parent=11 // pred_check
          %p182 = pneg %p94
        $region18: #{tpu_custom_call.1} parent=11 // pred_check_branch
          %184 = sbr.rel (%p182) target = $region20
        $region19: #{tpu_custom_call.1} parent=11 // pred_region
          _
        $region20: #{tpu_custom_call.1} parent=11 // pred_fallthru
          _
        // Predicated region
        $region21: #{tpu_custom_call.1} parent=11 // pred_check
          %p185 = pneg %p115
        $region22: #{tpu_custom_call.1} parent=11 // pred_check_branch
          %187 = sbr.rel (%p185) target = $region24
        $region23: #{tpu_custom_call.1} parent=11 // pred_region
          _
        $region24: #{tpu_custom_call.1} parent=11 // pred_fallthru
          _
        // Predicated region
        $region25: #{tpu_custom_call.1} parent=11 // pred_check
          %p188 = pneg %p136
        $region26: #{tpu_custom_call.1} parent=11 // pred_check_branch
          %190 = sbr.rel (%p188) target = $region28
        $region27: #{tpu_custom_call.1} parent=11 // pred_region
          _
        $region28: #{tpu_custom_call.1} parent=11 // pred_fallthru
          _
      $region12: #{tpu_custom_call.1} parent=5 // pred_fallthru
        _
      %p191 = scmp.lt.s32.totalorder %s14, 2
      // Predicated region
      $region29: #{tpu_custom_call.1} parent=5 // pred_check
        %p192 = pneg %p191
      $region30: #{tpu_custom_call.1} parent=5 // pred_check_branch
        %194 = sbr.rel (%p192) target = $region32
      $region31: #{tpu_custom_call.1} parent=5 // pred_region
        // Predicated region
        $region33: #{tpu_custom_call.1} parent=31 // pred_check
          %p195 = pneg %p46
        $region34: #{tpu_custom_call.1} parent=31 // pred_check_branch
          %197 = sbr.rel (%p195) target = $region36
        $region35: #{tpu_custom_call.1} parent=31 // pred_region
          %p198 = scmp.lt.s32.totalorder %s21, 1
          %s199 = scalar_select %p198, %s21, 1
          %s200 = smul.addr %s199, 54
          %s201 = smul.addr %s200, 8
          %s202 = scalar_lea.vmem %s0, %s201
        $region36: #{tpu_custom_call.1} parent=31 // pred_fallthru
          _
      $region32: #{tpu_custom_call.1} parent=5 // pred_fallthru
        _
      %p203 = scmp.le.s32.totalorder 1, %s14
      %p204 = scmp.lt.s32.totalorder %s14, 3
      %p205 = pnand %p203, %p204
      %p206 = pneg %p205
      // Predicated region
      $region37: #{tpu_custom_call.1} parent=5 // pred_check
        _
      $region38: #{tpu_custom_call.1} parent=5 // pred_check_branch
        %208 = sbr.rel (%p205) target = $region40
      $region39: #{tpu_custom_call.1} parent=5 // pred_region
        %s209 = ssub.s32 %s14, 1
        %p210 = scmp.lt.s32.totalorder %s23, 1
        %s211 = scalar_select %p210, %s23, 1
        %s212 = smul.addr %s211, 54
        %s213 = smul.addr %s212, 8
        %s214 = scalar_lea.vmem %s0, %s213
        %p215 = pneg %p52
        %p216 = pneg %p49
        %p217 = pneg %p73
        %p218 = pneg %p70
        %p219 = pneg %p94
        %p220 = pneg %p91
        %p221 = pneg %p115
        %p222 = pneg %p112
        %p223 = pneg %p136
        %p224 = pneg %p133
        %p225 = pneg %p164
        %p226 = pneg %p161
        %s227 = sand.u32 %s151, 1
        %s228 = scalar_lea.sflag [#allocation3], %s227
        %s229 = sand.u32 %s151, 1
        %s230 = smul.addr %s229, 256
        %s231 = scalar_lea.vmem [#allocation2], %s230
        %p232 = scmp.lt.s32.totalorder %s23, 1
        %s233 = scalar_select %p232, %s23, 1
        %s234 = smul.addr %s233, 54
        %s235 = smul.addr %s234, 8
        %s236 = scalar_lea.vmem %s0, %s235
        %s237 = smul.u32 16, %s24
        %s238 = smul.u32 %s24, 16
        %s239 = smul.u32 %s238, 24
        %s240 = scalar_lea.vmem %s236, %s239
        %v241 = vld [vmem:[%s240] sm:$0xff]
        %v242 = vld [vmem:[%s240 + $0x8] sm:$0xff]
        %v243 = vld [vmem:[%s240 + $0x18] sm:$0xff]
        %v244 = vld [vmem:[%s240 + $0x20] sm:$0xff]
        %v245 = vld [vmem:[%s240 + $0x30] sm:$0xff]
        %v246 = vld [vmem:[%s240 + $0x38] sm:$0xff]
        %v247 = vld [vmem:[%s240 + $0x48] sm:$0xff]
        %v248 = vld [vmem:[%s240 + $0x50] sm:$0xff]
        %v249 = vld [vmem:[%s240 + $0x60] sm:$0xff]
        %v250 = vld [vmem:[%s240 + $0x68] sm:$0xff]
        %v251 = vld [vmem:[%s240 + $0x78] sm:$0xff]
        %v252 = vld [vmem:[%s240 + $0x80] sm:$0xff]
        %v253 = vld [vmem:[%s240 + $0x90] sm:$0xff]
        %v254 = vld [vmem:[%s240 + $0x98] sm:$0xff]
        %v255 = vld [vmem:[%s240 + $0xa8] sm:$0xff]
        %v256 = vld [vmem:[%s240 + $0xb0] sm:$0xff]
        %v257 = vld [vmem:[%s240 + $0xc0] sm:$0xff]
        %v258 = vld [vmem:[%s240 + $0xc8] sm:$0xff]
        %v259 = vld [vmem:[%s240 + $0xd8] sm:$0xff]
        %v260 = vld [vmem:[%s240 + $0xe0] sm:$0xff]
        %v261 = vld [vmem:[%s240 + $0xf0] sm:$0xff]
        %v262 = vld [vmem:[%s240 + $0xf8] sm:$0xff]
        %v263 = vld [vmem:[%s240 + $0x108] sm:$0xff]
        %v264 = vld [vmem:[%s240 + $0x110] sm:$0xff]
        %v265 = vld [vmem:[%s240 + $0x120] sm:$0xff]
        %v266 = vld [vmem:[%s240 + $0x128] sm:$0xff]
        %v267 = vld [vmem:[%s240 + $0x138] sm:$0xff]
        %v268 = vld [vmem:[%s240 + $0x140] sm:$0xff]
        %v269 = vld [vmem:[%s240 + $0x150] sm:$0xff]
        %v270 = vld [vmem:[%s240 + $0x158] sm:$0xff]
        %v271 = vld [vmem:[%s240 + $0x168] sm:$0xff]
        %v272 = vld [vmem:[%s240 + $0x170] sm:$0xff]
        %v273 = vld [vmem:[%s240 + $0x1] sm:$0xff]
        %v274 = vld [vmem:[%s240 + $0x9] sm:$0xff]
        %v275 = vld [vmem:[%s240 + $0x19] sm:$0xff]
        %v276 = vld [vmem:[%s240 + $0x21] sm:$0xff]
        %v277 = vld [vmem:[%s240 + $0x31] sm:$0xff]
        %v278 = vld [vmem:[%s240 + $0x39] sm:$0xff]
        %v279 = vld [vmem:[%s240 + $0x49] sm:$0xff]
        %v280 = vld [vmem:[%s240 + $0x51] sm:$0xff]
        %v281 = vld [vmem:[%s240 + $0x61] sm:$0xff]
        %v282 = vld [vmem:[%s240 + $0x69] sm:$0xff]
        %v283 = vld [vmem:[%s240 + $0x79] sm:$0xff]
        %v284 = vld [vmem:[%s240 + $0x81] sm:$0xff]
        %v285 = vld [vmem:[%s240 + $0x91] sm:$0xff]
        %v286 = vld [vmem:[%s240 + $0x99] sm:$0xff]
        %v287 = vld [vmem:[%s240 + $0xa9] sm:$0xff]
        %v288 = vld [vmem:[%s240 + $0xb1] sm:$0xff]
        %v289 = vld [vmem:[%s240 + $0xc1] sm:$0xff]
        %v290 = vld [vmem:[%s240 + $0xc9] sm:$0xff]
        %v291 = vld [vmem:[%s240 + $0xd9] sm:$0xff]
        %v292 = vld [vmem:[%s240 + $0xe1] sm:$0xff]
        %v293 = vld [vmem:[%s240 + $0xf1] sm:$0xff]
        %v294 = vld [vmem:[%s240 + $0xf9] sm:$0xff]
        %v295 = vld [vmem:[%s240 + $0x109] sm:$0xff]
        %v296 = vld [vmem:[%s240 + $0x111] sm:$0xff]
        %v297 = vld [vmem:[%s240 + $0x121] sm:$0xff]
        %v298 = vld [vmem:[%s240 + $0x129] sm:$0xff]
        %v299 = vld [vmem:[%s240 + $0x139] sm:$0xff]
        %v300 = vld [vmem:[%s240 + $0x141] sm:$0xff]
        %v301 = vld [vmem:[%s240 + $0x151] sm:$0xff]
        %v302 = vld [vmem:[%s240 + $0x159] sm:$0xff]
        %v303 = vld [vmem:[%s240 + $0x169] sm:$0xff]
        %v304 = vld [vmem:[%s240 + $0x171] sm:$0xff]
        %v305 = vld [vmem:[%s240 + $0x2] sm:$0xff]
        %v306 = vld [vmem:[%s240 + $0xa] sm:$0xff]
        %v307 = vld [vmem:[%s240 + $0x1a] sm:$0xff]
        %v308 = vld [vmem:[%s240 + $0x22] sm:$0xff]
        %v309 = vld [vmem:[%s240 + $0x32] sm:$0xff]
        %v310 = vld [vmem:[%s240 + $0x3a] sm:$0xff]
        %v311 = vld [vmem:[%s240 + $0x4a] sm:$0xff]
        %v312 = vld [vmem:[%s240 + $0x52] sm:$0xff]
        %v313 = vld [vmem:[%s240 + $0x62] sm:$0xff]
        %v314 = vld [vmem:[%s240 + $0x6a] sm:$0xff]
        %v315 = vld [vmem:[%s240 + $0x7a] sm:$0xff]
        %v316 = vld [vmem:[%s240 + $0x82] sm:$0xff]
        %v317 = vld [vmem:[%s240 + $0x92] sm:$0xff]
        %v318 = vld [vmem:[%s240 + $0x9a] sm:$0xff]
        %v319 = vld [vmem:[%s240 + $0xaa] sm:$0xff]
        %v320 = vld [vmem:[%s240 + $0xb2] sm:$0xff]
        %v321 = vld [vmem:[%s240 + $0xc2] sm:$0xff]
        %v322 = vld [vmem:[%s240 + $0xca] sm:$0xff]
        %v323 = vld [vmem:[%s240 + $0xda] sm:$0xff]
        %v324 = vld [vmem:[%s240 + $0xe2] sm:$0xff]
        %v325 = vld [vmem:[%s240 + $0xf2] sm:$0xff]
        %v326 = vld [vmem:[%s240 + $0xfa] sm:$0xff]
        %v327 = vld [vmem:[%s240 + $0x10a] sm:$0xff]
        %v328 = vld [vmem:[%s240 + $0x112] sm:$0xff]
        %v329 = vld [vmem:[%s240 + $0x122] sm:$0xff]
        %v330 = vld [vmem:[%s240 + $0x12a] sm:$0xff]
        %v331 = vld [vmem:[%s240 + $0x13a] sm:$0xff]
        %v332 = vld [vmem:[%s240 + $0x142] sm:$0xff]
        %v333 = vld [vmem:[%s240 + $0x152] sm:$0xff]
        %v334 = vld [vmem:[%s240 + $0x15a] sm:$0xff]
        %v335 = vld [vmem:[%s240 + $0x16a] sm:$0xff]
        %v336 = vld [vmem:[%s240 + $0x172] sm:$0xff]
        %s337 = sadd.s32 %s238, 1
        %s338 = smul.u32 %s337, 24
        %s339 = scalar_lea.vmem %s236, %s338
        %v340 = vld [vmem:[%s339] sm:$0xff]
        %v341 = vld [vmem:[%s339 + $0x8] sm:$0xff]
        %v342 = vld [vmem:[%s339 + $0x18] sm:$0xff]
        %v343 = vld [vmem:[%s339 + $0x20] sm:$0xff]
        %v344 = vld [vmem:[%s339 + $0x30] sm:$0xff]
        %v345 = vld [vmem:[%s339 + $0x38] sm:$0xff]
        %v346 = vld [vmem:[%s339 + $0x48] sm:$0xff]
        %v347 = vld [vmem:[%s339 + $0x50] sm:$0xff]
        %v348 = vld [vmem:[%s339 + $0x60] sm:$0xff]
        %v349 = vld [vmem:[%s339 + $0x68] sm:$0xff]
        %v350 = vld [vmem:[%s339 + $0x78] sm:$0xff]
        %v351 = vld [vmem:[%s339 + $0x80] sm:$0xff]
        %v352 = vld [vmem:[%s339 + $0x90] sm:$0xff]
        %v353 = vld [vmem:[%s339 + $0x98] sm:$0xff]
        %v354 = vld [vmem:[%s339 + $0xa8] sm:$0xff]
        %v355 = vld [vmem:[%s339 + $0xb0] sm:$0xff]
        %v356 = vld [vmem:[%s339 + $0xc0] sm:$0xff]
        %v357 = vld [vmem:[%s339 + $0xc8] sm:$0xff]
        %v358 = vld [vmem:[%s339 + $0xd8] sm:$0xff]
        %v359 = vld [vmem:[%s339 + $0xe0] sm:$0xff]
        %v360 = vld [vmem:[%s339 + $0xf0] sm:$0xff]
        %v361 = vld [vmem:[%s339 + $0xf8] sm:$0xff]
        %v362 = vld [vmem:[%s339 + $0x108] sm:$0xff]
        %v363 = vld [vmem:[%s339 + $0x110] sm:$0xff]
        %v364 = vld [vmem:[%s339 + $0x120] sm:$0xff]
        %v365 = vld [vmem:[%s339 + $0x128] sm:$0xff]
        %v366 = vld [vmem:[%s339 + $0x138] sm:$0xff]
        %v367 = vld [vmem:[%s339 + $0x140] sm:$0xff]
        %v368 = vld [vmem:[%s339 + $0x150] sm:$0xff]
        %v369 = vld [vmem:[%s339 + $0x158] sm:$0xff]
        %v370 = vld [vmem:[%s339 + $0x168] sm:$0xff]
        %v371 = vld [vmem:[%s339 + $0x170] sm:$0xff]
        %v372 = vld [vmem:[%s339 + $0x1] sm:$0xff]
        %v373 = vld [vmem:[%s339 + $0x9] sm:$0xff]
        %v374 = vld [vmem:[%s339 + $0x19] sm:$0xff]
        %v375 = vld [vmem:[%s339 + $0x21] sm:$0xff]
        %v376 = vld [vmem:[%s339 + $0x31] sm:$0xff]
        %v377 = vld [vmem:[%s339 + $0x39] sm:$0xff]
        %v378 = vld [vmem:[%s339 + $0x49] sm:$0xff]
        %v379 = vld [vmem:[%s339 + $0x51] sm:$0xff]
        %v380 = vld [vmem:[%s339 + $0x61] sm:$0xff]
        %v381 = vld [vmem:[%s339 + $0x69] sm:$0xff]
        %v382 = vld [vmem:[%s339 + $0x79] sm:$0xff]
        %v383 = vld [vmem:[%s339 + $0x81] sm:$0xff]
        %v384 = vld [vmem:[%s339 + $0x91] sm:$0xff]
        %v385 = vld [vmem:[%s339 + $0x99] sm:$0xff]
        %v386 = vld [vmem:[%s339 + $0xa9] sm:$0xff]
        %v387 = vld [vmem:[%s339 + $0xb1] sm:$0xff]
        %v388 = vld [vmem:[%s339 + $0xc1] sm:$0xff]
        %v389 = vld [vmem:[%s339 + $0xc9] sm:$0xff]
        %v390 = vld [vmem:[%s339 + $0xd9] sm:$0xff]
        %v391 = vld [vmem:[%s339 + $0xe1] sm:$0xff]
        %v392 = vld [vmem:[%s339 + $0xf1] sm:$0xff]
        %v393 = vld [vmem:[%s339 + $0xf9] sm:$0xff]
        %v394 = vld [vmem:[%s339 + $0x109] sm:$0xff]
        %v395 = vld [vmem:[%s339 + $0x111] sm:$0xff]
        %v396 = vld [vmem:[%s339 + $0x121] sm:$0xff]
        %v397 = vld [vmem:[%s339 + $0x129] sm:$0xff]
        %v398 = vld [vmem:[%s339 + $0x139] sm:$0xff]
        %v399 = vld [vmem:[%s339 + $0x141] sm:$0xff]
        %v400 = vld [vmem:[%s339 + $0x151] sm:$0xff]
        %v401 = vld [vmem:[%s339 + $0x159] sm:$0xff]
        %v402 = vld [vmem:[%s339 + $0x169] sm:$0xff]
        %v403 = vld [vmem:[%s339 + $0x171] sm:$0xff]
        %v404 = vld [vmem:[%s339 + $0x2] sm:$0xff]
        %v405 = vld [vmem:[%s339 + $0xa] sm:$0xff]
        %v406 = vld [vmem:[%s339 + $0x1a] sm:$0xff]
        %v407 = vld [vmem:[%s339 + $0x22] sm:$0xff]
        %v408 = vld [vmem:[%s339 + $0x32] sm:$0xff]
        %v409 = vld [vmem:[%s339 + $0x3a] sm:$0xff]
        %v410 = vld [vmem:[%s339 + $0x4a] sm:$0xff]
        %v411 = vld [vmem:[%s339 + $0x52] sm:$0xff]
        %v412 = vld [vmem:[%s339 + $0x62] sm:$0xff]
        %v413 = vld [vmem:[%s339 + $0x6a] sm:$0xff]
        %v414 = vld [vmem:[%s339 + $0x7a] sm:$0xff]
        %v415 = vld [vmem:[%s339 + $0x82] sm:$0xff]
        %v416 = vld [vmem:[%s339 + $0x92] sm:$0xff]
        %v417 = vld [vmem:[%s339 + $0x9a] sm:$0xff]
        %v418 = vld [vmem:[%s339 + $0xaa] sm:$0xff]
        %v419 = vld [vmem:[%s339 + $0xb2] sm:$0xff]
        %v420 = vld [vmem:[%s339 + $0xc2] sm:$0xff]
        %v421 = vld [vmem:[%s339 + $0xca] sm:$0xff]
        %v422 = vld [vmem:[%s339 + $0xda] sm:$0xff]
        %v423 = vld [vmem:[%s339 + $0xe2] sm:$0xff]
        %v424 = vld [vmem:[%s339 + $0xf2] sm:$0xff]
        %v425 = vld [vmem:[%s339 + $0xfa] sm:$0xff]
        %v426 = vld [vmem:[%s339 + $0x10a] sm:$0xff]
        %v427 = vld [vmem:[%s339 + $0x112] sm:$0xff]
        %v428 = vld [vmem:[%s339 + $0x122] sm:$0xff]
        %v429 = vld [vmem:[%s339 + $0x12a] sm:$0xff]
        %v430 = vld [vmem:[%s339 + $0x13a] sm:$0xff]
        %v431 = vld [vmem:[%s339 + $0x142] sm:$0xff]
        %v432 = vld [vmem:[%s339 + $0x152] sm:$0xff]
        %v433 = vld [vmem:[%s339 + $0x15a] sm:$0xff]
        %v434 = vld [vmem:[%s339 + $0x16a] sm:$0xff]
        %v435 = vld [vmem:[%s339 + $0x172] sm:$0xff]
        %s436 = sadd.s32 %s238, 2
        %s437 = smul.u32 %s436, 24
        %s438 = scalar_lea.vmem %s236, %s437
        %v439 = vld [vmem:[%s438] sm:$0xff]
        %v440 = vld [vmem:[%s438 + $0x8] sm:$0xff]
        %v441 = vld [vmem:[%s438 + $0x18] sm:$0xff]
        %v442 = vld [vmem:[%s438 + $0x20] sm:$0xff]
        %v443 = vld [vmem:[%s438 + $0x30] sm:$0xff]
        %v444 = vld [vmem:[%s438 + $0x38] sm:$0xff]
        %v445 = vld [vmem:[%s438 + $0x48] sm:$0xff]
        %v446 = vld [vmem:[%s438 + $0x50] sm:$0xff]
        %v447 = vld [vmem:[%s438 + $0x60] sm:$0xff]
        %v448 = vld [vmem:[%s438 + $0x68] sm:$0xff]
        %v449 = vld [vmem:[%s438 + $0x78] sm:$0xff]
        %v450 = vld [vmem:[%s438 + $0x80] sm:$0xff]
        %v451 = vld [vmem:[%s438 + $0x90] sm:$0xff]
        %v452 = vld [vmem:[%s438 + $0x98] sm:$0xff]
        %v453 = vld [vmem:[%s438 + $0xa8] sm:$0xff]
        %v454 = vld [vmem:[%s438 + $0xb0] sm:$0xff]
        %v455 = vld [vmem:[%s438 + $0xc0] sm:$0xff]
        %v456 = vld [vmem:[%s438 + $0xc8] sm:$0xff]
        %v457 = vld [vmem:[%s438 + $0xd8] sm:$0xff]
        %v458 = vld [vmem:[%s438 + $0xe0] sm:$0xff]
        %v459 = vld [vmem:[%s438 + $0xf0] sm:$0xff]
        %v460 = vld [vmem:[%s438 + $0xf8] sm:$0xff]
        %v461 = vld [vmem:[%s438 + $0x108] sm:$0xff]
        %v462 = vld [vmem:[%s438 + $0x110] sm:$0xff]
        %v463 = vld [vmem:[%s438 + $0x120] sm:$0xff]
        %v464 = vld [vmem:[%s438 + $0x128] sm:$0xff]
        %v465 = vld [vmem:[%s438 + $0x138] sm:$0xff]
        %v466 = vld [vmem:[%s438 + $0x140] sm:$0xff]
        %v467 = vld [vmem:[%s438 + $0x150] sm:$0xff]
        %v468 = vld [vmem:[%s438 + $0x158] sm:$0xff]
        %v469 = vld [vmem:[%s438 + $0x168] sm:$0xff]
        %v470 = vld [vmem:[%s438 + $0x170] sm:$0xff]
        %v471 = vld [vmem:[%s438 + $0x1] sm:$0xff]
        %v472 = vld [vmem:[%s438 + $0x9] sm:$0xff]
        %v473 = vld [vmem:[%s438 + $0x19] sm:$0xff]
        %v474 = vld [vmem:[%s438 + $0x21] sm:$0xff]
        %v475 = vld [vmem:[%s438 + $0x31] sm:$0xff]
        %v476 = vld [vmem:[%s438 + $0x39] sm:$0xff]
        %v477 = vld [vmem:[%s438 + $0x49] sm:$0xff]
        %v478 = vld [vmem:[%s438 + $0x51] sm:$0xff]
        %v479 = vld [vmem:[%s438 + $0x61] sm:$0xff]
        %v480 = vld [vmem:[%s438 + $0x69] sm:$0xff]
        %v481 = vld [vmem:[%s438 + $0x79] sm:$0xff]
        %v482 = vld [vmem:[%s438 + $0x81] sm:$0xff]
        %v483 = vld [vmem:[%s438 + $0x91] sm:$0xff]
        %v484 = vld [vmem:[%s438 + $0x99] sm:$0xff]
        %v485 = vld [vmem:[%s438 + $0xa9] sm:$0xff]
        %v486 = vld [vmem:[%s438 + $0xb1] sm:$0xff]
        %v487 = vld [vmem:[%s438 + $0xc1] sm:$0xff]
        %v488 = vld [vmem:[%s438 + $0xc9] sm:$0xff]
        %v489 = vld [vmem:[%s438 + $0xd9] sm:$0xff]
        %v490 = vld [vmem:[%s438 + $0xe1] sm:$0xff]
        %v491 = vld [vmem:[%s438 + $0xf1] sm:$0xff]
        %v492 = vld [vmem:[%s438 + $0xf9] sm:$0xff]
        %v493 = vld [vmem:[%s438 + $0x109] sm:$0xff]
        %v494 = vld [vmem:[%s438 + $0x111] sm:$0xff]
        %v495 = vld [vmem:[%s438 + $0x121] sm:$0xff]
        %v496 = vld [vmem:[%s438 + $0x129] sm:$0xff]
        %v497 = vld [vmem:[%s438 + $0x139] sm:$0xff]
        %v498 = vld [vmem:[%s438 + $0x141] sm:$0xff]
        %v499 = vld [vmem:[%s438 + $0x151] sm:$0xff]
        %v500 = vld [vmem:[%s438 + $0x159] sm:$0xff]
        %v501 = vld [vmem:[%s438 + $0x169] sm:$0xff]
        %v502 = vld [vmem:[%s438 + $0x171] sm:$0xff]
        %v503 = vld [vmem:[%s438 + $0x2] sm:$0xff]
        %v504 = vld [vmem:[%s438 + $0xa] sm:$0xff]
        %v505 = vld [vmem:[%s438 + $0x1a] sm:$0xff]
        %v506 = vld [vmem:[%s438 + $0x22] sm:$0xff]
        %v507 = vld [vmem:[%s438 + $0x32] sm:$0xff]
        %v508 = vld [vmem:[%s438 + $0x3a] sm:$0xff]
        %v509 = vld [vmem:[%s438 + $0x4a] sm:$0xff]
        %v510 = vld [vmem:[%s438 + $0x52] sm:$0xff]
        %v511 = vld [vmem:[%s438 + $0x62] sm:$0xff]
        %v512 = vld [vmem:[%s438 + $0x6a] sm:$0xff]
        %v513 = vld [vmem:[%s438 + $0x7a] sm:$0xff]
        %v514 = vld [vmem:[%s438 + $0x82] sm:$0xff]
        %v515 = vld [vmem:[%s438 + $0x92] sm:$0xff]
        %v516 = vld [vmem:[%s438 + $0x9a] sm:$0xff]
        %v517 = vld [vmem:[%s438 + $0xaa] sm:$0xff]
        %v518 = vld [vmem:[%s438 + $0xb2] sm:$0xff]
        %v519 = vld [vmem:[%s438 + $0xc2] sm:$0xff]
        %v520 = vld [vmem:[%s438 + $0xca] sm:$0xff]
        %v521 = vld [vmem:[%s438 + $0xda] sm:$0xff]
        %v522 = vld [vmem:[%s438 + $0xe2] sm:$0xff]
        %v523 = vld [vmem:[%s438 + $0xf2] sm:$0xff]
        %v524 = vld [vmem:[%s438 + $0xfa] sm:$0xff]
        %v525 = vld [vmem:[%s438 + $0x10a] sm:$0xff]
        %v526 = vld [vmem:[%s438 + $0x112] sm:$0xff]
        %v527 = vld [vmem:[%s438 + $0x122] sm:$0xff]
        %v528 = vld [vmem:[%s438 + $0x12a] sm:$0xff]
        %v529 = vld [vmem:[%s438 + $0x13a] sm:$0xff]
        %v530 = vld [vmem:[%s438 + $0x142] sm:$0xff]
        %v531 = vld [vmem:[%s438 + $0x152] sm:$0xff]
        %v532 = vld [vmem:[%s438 + $0x15a] sm:$0xff]
        %v533 = vld [vmem:[%s438 + $0x16a] sm:$0xff]
        %v534 = vld [vmem:[%s438 + $0x172] sm:$0xff]
        %567 = vrot.lane.b32.xlu0 %v273, 4
        %v568 = vpop.permute.xlu0 %567
        %569 = vrot.lane.b32.xlu0 %v274, 4
        %v570 = vpop.permute.xlu0 %569
        %571 = vrot.lane.b32.xlu0 %v275, 4
        %v572 = vpop.permute.xlu0 %571
        %573 = vrot.lane.b32.xlu0 %v276, 4
        %v574 = vpop.permute.xlu0 %573
        %575 = vrot.lane.b32.xlu0 %v277, 4
        %v576 = vpop.permute.xlu0 %575
        %577 = vrot.lane.b32.xlu0 %v278, 4
        %v578 = vpop.permute.xlu0 %577
        %579 = vrot.lane.b32.xlu0 %v279, 4
        %v580 = vpop.permute.xlu0 %579
        %581 = vrot.lane.b32.xlu0 %v280, 4
        %v582 = vpop.permute.xlu0 %581
        %583 = vrot.lane.b32.xlu0 %v281, 4
        %v584 = vpop.permute.xlu0 %583
        %585 = vrot.lane.b32.xlu0 %v282, 4
        %v586 = vpop.permute.xlu0 %585
        %587 = vrot.lane.b32.xlu0 %v283, 4
        %v588 = vpop.permute.xlu0 %587
        %589 = vrot.lane.b32.xlu0 %v284, 4
        %v590 = vpop.permute.xlu0 %589
        %591 = vrot.lane.b32.xlu0 %v285, 4
        %v592 = vpop.permute.xlu0 %591
        %593 = vrot.lane.b32.xlu0 %v286, 4
        %v594 = vpop.permute.xlu0 %593
        %595 = vrot.lane.b32.xlu0 %v287, 4
        %v596 = vpop.permute.xlu0 %595
        %597 = vrot.lane.b32.xlu0 %v288, 4
        %v598 = vpop.permute.xlu0 %597
        %599 = vrot.lane.b32.xlu0 %v289, 4
        %v600 = vpop.permute.xlu0 %599
        %601 = vrot.lane.b32.xlu0 %v290, 4
        %v602 = vpop.permute.xlu0 %601
        %603 = vrot.lane.b32.xlu0 %v291, 4
        %v604 = vpop.permute.xlu0 %603
        %605 = vrot.lane.b32.xlu0 %v292, 4
        %v606 = vpop.permute.xlu0 %605
        %607 = vrot.lane.b32.xlu0 %v293, 4
        %v608 = vpop.permute.xlu0 %607
        %609 = vrot.lane.b32.xlu0 %v294, 4
        %v610 = vpop.permute.xlu0 %609
        %611 = vrot.lane.b32.xlu0 %v295, 4
        %v612 = vpop.permute.xlu0 %611
        %613 = vrot.lane.b32.xlu0 %v296, 4
        %v614 = vpop.permute.xlu0 %613
        %615 = vrot.lane.b32.xlu0 %v297, 4
        %v616 = vpop.permute.xlu0 %615
        %617 = vrot.lane.b32.xlu0 %v298, 4
        %v618 = vpop.permute.xlu0 %617
        %619 = vrot.lane.b32.xlu0 %v299, 4
        %v620 = vpop.permute.xlu0 %619
        %621 = vrot.lane.b32.xlu0 %v300, 4
        %v622 = vpop.permute.xlu0 %621
        %623 = vrot.lane.b32.xlu0 %v301, 4
        %v624 = vpop.permute.xlu0 %623
        %625 = vrot.lane.b32.xlu0 %v302, 4
        %v626 = vpop.permute.xlu0 %625
        %627 = vrot.lane.b32.xlu0 %v303, 4
        %v628 = vpop.permute.xlu0 %627
        %629 = vrot.lane.b32.xlu0 %v304, 4
        %v630 = vpop.permute.xlu0 %629
        %695 = vrot.lane.b32.xlu0 %v305, 8
        %v696 = vpop.permute.xlu0 %695
        %697 = vrot.lane.b32.xlu0 %v306, 8
        %v698 = vpop.permute.xlu0 %697
        %699 = vrot.lane.b32.xlu0 %v307, 8
        %v700 = vpop.permute.xlu0 %699
        %701 = vrot.lane.b32.xlu0 %v308, 8
        %v702 = vpop.permute.xlu0 %701
        %703 = vrot.lane.b32.xlu0 %v309, 8
        %v704 = vpop.permute.xlu0 %703
        %705 = vrot.lane.b32.xlu0 %v310, 8
        %v706 = vpop.permute.xlu0 %705
        %707 = vrot.lane.b32.xlu0 %v311, 8
        %v708 = vpop.permute.xlu0 %707
        %709 = vrot.lane.b32.xlu0 %v312, 8
        %v710 = vpop.permute.xlu0 %709
        %711 = vrot.lane.b32.xlu0 %v313, 8
        %v712 = vpop.permute.xlu0 %711
        %713 = vrot.lane.b32.xlu0 %v314, 8
        %v714 = vpop.permute.xlu0 %713
        %715 = vrot.lane.b32.xlu0 %v315, 8
        %v716 = vpop.permute.xlu0 %715
        %717 = vrot.lane.b32.xlu0 %v316, 8
        %v718 = vpop.permute.xlu0 %717
        %719 = vrot.lane.b32.xlu0 %v317, 8
        %v720 = vpop.permute.xlu0 %719
        %721 = vrot.lane.b32.xlu0 %v318, 8
        %v722 = vpop.permute.xlu0 %721
        %723 = vrot.lane.b32.xlu0 %v319, 8
        %v724 = vpop.permute.xlu0 %723
        %725 = vrot.lane.b32.xlu0 %v320, 8
        %v726 = vpop.permute.xlu0 %725
        %727 = vrot.lane.b32.xlu0 %v321, 8
        %v728 = vpop.permute.xlu0 %727
        %729 = vrot.lane.b32.xlu0 %v322, 8
        %v730 = vpop.permute.xlu0 %729
        %731 = vrot.lane.b32.xlu0 %v323, 8
        %v732 = vpop.permute.xlu0 %731
        %733 = vrot.lane.b32.xlu0 %v324, 8
        %v734 = vpop.permute.xlu0 %733
        %735 = vrot.lane.b32.xlu0 %v325, 8
        %v736 = vpop.permute.xlu0 %735
        %737 = vrot.lane.b32.xlu0 %v326, 8
        %v738 = vpop.permute.xlu0 %737
        %739 = vrot.lane.b32.xlu0 %v327, 8
        %v740 = vpop.permute.xlu0 %739
        %741 = vrot.lane.b32.xlu0 %v328, 8
        %v742 = vpop.permute.xlu0 %741
        %743 = vrot.lane.b32.xlu0 %v329, 8
        %v744 = vpop.permute.xlu0 %743
        %745 = vrot.lane.b32.xlu0 %v330, 8
        %v746 = vpop.permute.xlu0 %745
        %747 = vrot.lane.b32.xlu0 %v331, 8
        %v748 = vpop.permute.xlu0 %747
        %749 = vrot.lane.b32.xlu0 %v332, 8
        %v750 = vpop.permute.xlu0 %749
        %751 = vrot.lane.b32.xlu0 %v333, 8
        %v752 = vpop.permute.xlu0 %751
        %753 = vrot.lane.b32.xlu0 %v334, 8
        %v754 = vpop.permute.xlu0 %753
        %755 = vrot.lane.b32.xlu0 %v335, 8
        %v756 = vpop.permute.xlu0 %755
        %757 = vrot.lane.b32.xlu0 %v336, 8
        %v758 = vpop.permute.xlu0 %757
        %823 = vrot.lane.b32.xlu0 %v340, 12
        %v824 = vpop.permute.xlu0 %823
        %825 = vrot.lane.b32.xlu0 %v341, 12
        %v826 = vpop.permute.xlu0 %825
        %827 = vrot.lane.b32.xlu0 %v342, 12
        %v828 = vpop.permute.xlu0 %827
        %829 = vrot.lane.b32.xlu0 %v343, 12
        %v830 = vpop.permute.xlu0 %829
        %831 = vrot.lane.b32.xlu0 %v344, 12
        %v832 = vpop.permute.xlu0 %831
        %833 = vrot.lane.b32.xlu0 %v345, 12
        %v834 = vpop.permute.xlu0 %833
        %835 = vrot.lane.b32.xlu0 %v346, 12
        %v836 = vpop.permute.xlu0 %835
        %837 = vrot.lane.b32.xlu0 %v347, 12
        %v838 = vpop.permute.xlu0 %837
        %839 = vrot.lane.b32.xlu0 %v348, 12
        %v840 = vpop.permute.xlu0 %839
        %841 = vrot.lane.b32.xlu0 %v349, 12
        %v842 = vpop.permute.xlu0 %841
        %843 = vrot.lane.b32.xlu0 %v350, 12
        %v844 = vpop.permute.xlu0 %843
        %845 = vrot.lane.b32.xlu0 %v351, 12
        %v846 = vpop.permute.xlu0 %845
        %847 = vrot.lane.b32.xlu0 %v352, 12
        %v848 = vpop.permute.xlu0 %847
        %849 = vrot.lane.b32.xlu0 %v353, 12
        %v850 = vpop.permute.xlu0 %849
        %851 = vrot.lane.b32.xlu0 %v354, 12
        %v852 = vpop.permute.xlu0 %851
        %853 = vrot.lane.b32.xlu0 %v355, 12
        %v854 = vpop.permute.xlu0 %853
        %855 = vrot.lane.b32.xlu0 %v356, 12
        %v856 = vpop.permute.xlu0 %855
        %857 = vrot.lane.b32.xlu0 %v357, 12
        %v858 = vpop.permute.xlu0 %857
        %859 = vrot.lane.b32.xlu0 %v358, 12
        %v860 = vpop.permute.xlu0 %859
        %861 = vrot.lane.b32.xlu0 %v359, 12
        %v862 = vpop.permute.xlu0 %861
        %863 = vrot.lane.b32.xlu0 %v360, 12
        %v864 = vpop.permute.xlu0 %863
        %865 = vrot.lane.b32.xlu0 %v361, 12
        %v866 = vpop.permute.xlu0 %865
        %867 = vrot.lane.b32.xlu0 %v362, 12
        %v868 = vpop.permute.xlu0 %867
        %869 = vrot.lane.b32.xlu0 %v363, 12
        %v870 = vpop.permute.xlu0 %869
        %871 = vrot.lane.b32.xlu0 %v364, 12
        %v872 = vpop.permute.xlu0 %871
        %873 = vrot.lane.b32.xlu0 %v365, 12
        %v874 = vpop.permute.xlu0 %873
        %875 = vrot.lane.b32.xlu0 %v366, 12
        %v876 = vpop.permute.xlu0 %875
        %877 = vrot.lane.b32.xlu0 %v367, 12
        %v878 = vpop.permute.xlu0 %877
        %879 = vrot.lane.b32.xlu0 %v368, 12
        %v880 = vpop.permute.xlu0 %879
        %881 = vrot.lane.b32.xlu0 %v369, 12
        %v882 = vpop.permute.xlu0 %881
        %883 = vrot.lane.b32.xlu0 %v370, 12
        %v884 = vpop.permute.xlu0 %883
        %885 = vrot.lane.b32.xlu0 %v371, 12
        %v886 = vpop.permute.xlu0 %885
        %951 = vrot.lane.b32.xlu0 %v372, 16
        %v952 = vpop.permute.xlu0 %951
        %953 = vrot.lane.b32.xlu0 %v373, 16
        %v954 = vpop.permute.xlu0 %953
        %955 = vrot.lane.b32.xlu0 %v374, 16
        %v956 = vpop.permute.xlu0 %955
        %957 = vrot.lane.b32.xlu0 %v375, 16
        %v958 = vpop.permute.xlu0 %957
        %959 = vrot.lane.b32.xlu0 %v376, 16
        %v960 = vpop.permute.xlu0 %959
        %961 = vrot.lane.b32.xlu0 %v377, 16
        %v962 = vpop.permute.xlu0 %961
        %963 = vrot.lane.b32.xlu0 %v378, 16
        %v964 = vpop.permute.xlu0 %963
        %965 = vrot.lane.b32.xlu0 %v379, 16
        %v966 = vpop.permute.xlu0 %965
        %967 = vrot.lane.b32.xlu0 %v380, 16
        %v968 = vpop.permute.xlu0 %967
        %969 = vrot.lane.b32.xlu0 %v381, 16
        %v970 = vpop.permute.xlu0 %969
        %971 = vrot.lane.b32.xlu0 %v382, 16
        %v972 = vpop.permute.xlu0 %971
        %973 = vrot.lane.b32.xlu0 %v383, 16
        %v974 = vpop.permute.xlu0 %973
        %975 = vrot.lane.b32.xlu0 %v384, 16
        %v976 = vpop.permute.xlu0 %975
        %977 = vrot.lane.b32.xlu0 %v385, 16
        %v978 = vpop.permute.xlu0 %977
        %979 = vrot.lane.b32.xlu0 %v386, 16
        %v980 = vpop.permute.xlu0 %979
        %981 = vrot.lane.b32.xlu0 %v387, 16
        %v982 = vpop.permute.xlu0 %981
        %983 = vrot.lane.b32.xlu0 %v388, 16
        %v984 = vpop.permute.xlu0 %983
        %985 = vrot.lane.b32.xlu0 %v389, 16
        %v986 = vpop.permute.xlu0 %985
        %987 = vrot.lane.b32.xlu0 %v390, 16
        %v988 = vpop.permute.xlu0 %987
        %989 = vrot.lane.b32.xlu0 %v391, 16
        %v990 = vpop.permute.xlu0 %989
        %991 = vrot.lane.b32.xlu0 %v392, 16
        %v992 = vpop.permute.xlu0 %991
        %993 = vrot.lane.b32.xlu0 %v393, 16
        %v994 = vpop.permute.xlu0 %993
        %995 = vrot.lane.b32.xlu0 %v394, 16
        %v996 = vpop.permute.xlu0 %995
        %997 = vrot.lane.b32.xlu0 %v395, 16
        %v998 = vpop.permute.xlu0 %997
        %999 = vrot.lane.b32.xlu0 %v396, 16
        %v1000 = vpop.permute.xlu0 %999
        %1001 = vrot.lane.b32.xlu0 %v397, 16
        %v1002 = vpop.permute.xlu0 %1001
        %1003 = vrot.lane.b32.xlu0 %v398, 16
        %v1004 = vpop.permute.xlu0 %1003
        %1005 = vrot.lane.b32.xlu0 %v399, 16
        %v1006 = vpop.permute.xlu0 %1005
        %1007 = vrot.lane.b32.xlu0 %v400, 16
        %v1008 = vpop.permute.xlu0 %1007
        %1009 = vrot.lane.b32.xlu0 %v401, 16
        %v1010 = vpop.permute.xlu0 %1009
        %1011 = vrot.lane.b32.xlu0 %v402, 16
        %v1012 = vpop.permute.xlu0 %1011
        %1013 = vrot.lane.b32.xlu0 %v403, 16
        %v1014 = vpop.permute.xlu0 %1013
        %1079 = vrot.lane.b32.xlu0 %v404, 20
        %v1080 = vpop.permute.xlu0 %1079
        %1081 = vrot.lane.b32.xlu0 %v405, 20
        %v1082 = vpop.permute.xlu0 %1081
        %1083 = vrot.lane.b32.xlu0 %v406, 20
        %v1084 = vpop.permute.xlu0 %1083
        %1085 = vrot.lane.b32.xlu0 %v407, 20
        %v1086 = vpop.permute.xlu0 %1085
        %1087 = vrot.lane.b32.xlu0 %v408, 20
        %v1088 = vpop.permute.xlu0 %1087
        %1089 = vrot.lane.b32.xlu0 %v409, 20
        %v1090 = vpop.permute.xlu0 %1089
        %1091 = vrot.lane.b32.xlu0 %v410, 20
        %v1092 = vpop.permute.xlu0 %1091
        %1093 = vrot.lane.b32.xlu0 %v411, 20
        %v1094 = vpop.permute.xlu0 %1093
        %1095 = vrot.lane.b32.xlu0 %v412, 20
        %v1096 = vpop.permute.xlu0 %1095
        %1097 = vrot.lane.b32.xlu0 %v413, 20
        %v1098 = vpop.permute.xlu0 %1097
        %1099 = vrot.lane.b32.xlu0 %v414, 20
        %v1100 = vpop.permute.xlu0 %1099
        %1101 = vrot.lane.b32.xlu0 %v415, 20
        %v1102 = vpop.permute.xlu0 %1101
        %1103 = vrot.lane.b32.xlu0 %v416, 20
        %v1104 = vpop.permute.xlu0 %1103
        %1105 = vrot.lane.b32.xlu0 %v417, 20
        %v1106 = vpop.permute.xlu0 %1105
        %1107 = vrot.lane.b32.xlu0 %v418, 20
        %v1108 = vpop.permute.xlu0 %1107
        %1109 = vrot.lane.b32.xlu0 %v419, 20
        %v1110 = vpop.permute.xlu0 %1109
        %1111 = vrot.lane.b32.xlu0 %v420, 20
        %v1112 = vpop.permute.xlu0 %1111
        %1113 = vrot.lane.b32.xlu0 %v421, 20
        %v1114 = vpop.permute.xlu0 %1113
        %1115 = vrot.lane.b32.xlu0 %v422, 20
        %v1116 = vpop.permute.xlu0 %1115
        %1117 = vrot.lane.b32.xlu0 %v423, 20
        %v1118 = vpop.permute.xlu0 %1117
        %1119 = vrot.lane.b32.xlu0 %v424, 20
        %v1120 = vpop.permute.xlu0 %1119
        %1121 = vrot.lane.b32.xlu0 %v425, 20
        %v1122 = vpop.permute.xlu0 %1121
        %1123 = vrot.lane.b32.xlu0 %v426, 20
        %v1124 = vpop.permute.xlu0 %1123
        %1125 = vrot.lane.b32.xlu0 %v427, 20
        %v1126 = vpop.permute.xlu0 %1125
        %1127 = vrot.lane.b32.xlu0 %v428, 20
        %v1128 = vpop.permute.xlu0 %1127
        %1129 = vrot.lane.b32.xlu0 %v429, 20
        %v1130 = vpop.permute.xlu0 %1129
        %1131 = vrot.lane.b32.xlu0 %v430, 20
        %v1132 = vpop.permute.xlu0 %1131
        %1133 = vrot.lane.b32.xlu0 %v431, 20
        %v1134 = vpop.permute.xlu0 %1133
        %1135 = vrot.lane.b32.xlu0 %v432, 20
        %v1136 = vpop.permute.xlu0 %1135
        %1137 = vrot.lane.b32.xlu0 %v433, 20
        %v1138 = vpop.permute.xlu0 %1137
        %1139 = vrot.lane.b32.xlu0 %v434, 20
        %v1140 = vpop.permute.xlu0 %1139
        %1141 = vrot.lane.b32.xlu0 %v435, 20
        %v1142 = vpop.permute.xlu0 %1141
        %1207 = vrot.lane.b32.xlu0 %v439, 24
        %v1208 = vpop.permute.xlu0 %1207
        %1209 = vrot.lane.b32.xlu0 %v440, 24
        %v1210 = vpop.permute.xlu0 %1209
        %1211 = vrot.lane.b32.xlu0 %v441, 24
        %v1212 = vpop.permute.xlu0 %1211
        %1213 = vrot.lane.b32.xlu0 %v442, 24
        %v1214 = vpop.permute.xlu0 %1213
        %1215 = vrot.lane.b32.xlu0 %v443, 24
        %v1216 = vpop.permute.xlu0 %1215
        %1217 = vrot.lane.b32.xlu0 %v444, 24
        %v1218 = vpop.permute.xlu0 %1217
        %1219 = vrot.lane.b32.xlu0 %v445, 24
        %v1220 = vpop.permute.xlu0 %1219
        %1221 = vrot.lane.b32.xlu0 %v446, 24
        %v1222 = vpop.permute.xlu0 %1221
        %1223 = vrot.lane.b32.xlu0 %v447, 24
        %v1224 = vpop.permute.xlu0 %1223
        %1225 = vrot.lane.b32.xlu0 %v448, 24
        %v1226 = vpop.permute.xlu0 %1225
        %1227 = vrot.lane.b32.xlu0 %v449, 24
        %v1228 = vpop.permute.xlu0 %1227
        %1229 = vrot.lane.b32.xlu0 %v450, 24
        %v1230 = vpop.permute.xlu0 %1229
        %1231 = vrot.lane.b32.xlu0 %v451, 24
        %v1232 = vpop.permute.xlu0 %1231
        %1233 = vrot.lane.b32.xlu0 %v452, 24
        %v1234 = vpop.permute.xlu0 %1233
        %1235 = vrot.lane.b32.xlu0 %v453, 24
        %v1236 = vpop.permute.xlu0 %1235
        %1237 = vrot.lane.b32.xlu0 %v454, 24
        %v1238 = vpop.permute.xlu0 %1237
        %1239 = vrot.lane.b32.xlu0 %v455, 24
        %v1240 = vpop.permute.xlu0 %1239
        %1241 = vrot.lane.b32.xlu0 %v456, 24
        %v1242 = vpop.permute.xlu0 %1241
        %1243 = vrot.lane.b32.xlu0 %v457, 24
        %v1244 = vpop.permute.xlu0 %1243
        %1245 = vrot.lane.b32.xlu0 %v458, 24
        %v1246 = vpop.permute.xlu0 %1245
        %1247 = vrot.lane.b32.xlu0 %v459, 24
        %v1248 = vpop.permute.xlu0 %1247
        %1249 = vrot.lane.b32.xlu0 %v460, 24
        %v1250 = vpop.permute.xlu0 %1249
        %1251 = vrot.lane.b32.xlu0 %v461, 24
        %v1252 = vpop.permute.xlu0 %1251
        %1253 = vrot.lane.b32.xlu0 %v462, 24
        %v1254 = vpop.permute.xlu0 %1253
        %1255 = vrot.lane.b32.xlu0 %v463, 24
        %v1256 = vpop.permute.xlu0 %1255
        %1257 = vrot.lane.b32.xlu0 %v464, 24
        %v1258 = vpop.permute.xlu0 %1257
        %1259 = vrot.lane.b32.xlu0 %v465, 24
        %v1260 = vpop.permute.xlu0 %1259
        %1261 = vrot.lane.b32.xlu0 %v466, 24
        %v1262 = vpop.permute.xlu0 %1261
        %1263 = vrot.lane.b32.xlu0 %v467, 24
        %v1264 = vpop.permute.xlu0 %1263
        %1265 = vrot.lane.b32.xlu0 %v468, 24
        %v1266 = vpop.permute.xlu0 %1265
        %1267 = vrot.lane.b32.xlu0 %v469, 24
        %v1268 = vpop.permute.xlu0 %1267
        %1269 = vrot.lane.b32.xlu0 %v470, 24
        %v1270 = vpop.permute.xlu0 %1269
        %1335 = vrot.lane.b32.xlu0 %v471, 28
        %v1336 = vpop.permute.xlu0 %1335
        %1337 = vrot.lane.b32.xlu0 %v472, 28
        %v1338 = vpop.permute.xlu0 %1337
        %1339 = vrot.lane.b32.xlu0 %v473, 28
        %v1340 = vpop.permute.xlu0 %1339
        %1341 = vrot.lane.b32.xlu0 %v474, 28
        %v1342 = vpop.permute.xlu0 %1341
        %1343 = vrot.lane.b32.xlu0 %v475, 28
        %v1344 = vpop.permute.xlu0 %1343
        %1345 = vrot.lane.b32.xlu0 %v476, 28
        %v1346 = vpop.permute.xlu0 %1345
        %1347 = vrot.lane.b32.xlu0 %v477, 28
        %v1348 = vpop.permute.xlu0 %1347
        %1349 = vrot.lane.b32.xlu0 %v478, 28
        %v1350 = vpop.permute.xlu0 %1349
        %1351 = vrot.lane.b32.xlu0 %v479, 28
        %v1352 = vpop.permute.xlu0 %1351
        %1353 = vrot.lane.b32.xlu0 %v480, 28
        %v1354 = vpop.permute.xlu0 %1353
        %1355 = vrot.lane.b32.xlu0 %v481, 28
        %v1356 = vpop.permute.xlu0 %1355
        %1357 = vrot.lane.b32.xlu0 %v482, 28
        %v1358 = vpop.permute.xlu0 %1357
        %1359 = vrot.lane.b32.xlu0 %v483, 28
        %v1360 = vpop.permute.xlu0 %1359
        %1361 = vrot.lane.b32.xlu0 %v484, 28
        %v1362 = vpop.permute.xlu0 %1361
        %1363 = vrot.lane.b32.xlu0 %v485, 28
        %v1364 = vpop.permute.xlu0 %1363
        %1365 = vrot.lane.b32.xlu0 %v486, 28
        %v1366 = vpop.permute.xlu0 %1365
        %1367 = vrot.lane.b32.xlu0 %v487, 28
        %v1368 = vpop.permute.xlu0 %1367
        %1369 = vrot.lane.b32.xlu0 %v488, 28
        %v1370 = vpop.permute.xlu0 %1369
        %1371 = vrot.lane.b32.xlu0 %v489, 28
        %v1372 = vpop.permute.xlu0 %1371
        %1373 = vrot.lane.b32.xlu0 %v490, 28
        %v1374 = vpop.permute.xlu0 %1373
        %1375 = vrot.lane.b32.xlu0 %v491, 28
        %v1376 = vpop.permute.xlu0 %1375
        %1377 = vrot.lane.b32.xlu0 %v492, 28
        %v1378 = vpop.permute.xlu0 %1377
        %1379 = vrot.lane.b32.xlu0 %v493, 28
        %v1380 = vpop.permute.xlu0 %1379
        %1381 = vrot.lane.b32.xlu0 %v494, 28
        %v1382 = vpop.permute.xlu0 %1381
        %1383 = vrot.lane.b32.xlu0 %v495, 28
        %v1384 = vpop.permute.xlu0 %1383
        %1385 = vrot.lane.b32.xlu0 %v496, 28
        %v1386 = vpop.permute.xlu0 %1385
        %1387 = vrot.lane.b32.xlu0 %v497, 28
        %v1388 = vpop.permute.xlu0 %1387
        %1389 = vrot.lane.b32.xlu0 %v498, 28
        %v1390 = vpop.permute.xlu0 %1389
        %1391 = vrot.lane.b32.xlu0 %v499, 28
        %v1392 = vpop.permute.xlu0 %1391
        %1393 = vrot.lane.b32.xlu0 %v500, 28
        %v1394 = vpop.permute.xlu0 %1393
        %1395 = vrot.lane.b32.xlu0 %v501, 28
        %v1396 = vpop.permute.xlu0 %1395
        %1397 = vrot.lane.b32.xlu0 %v502, 28
        %v1398 = vpop.permute.xlu0 %1397
        %1463 = vrot.lane.b32.xlu0 %v503, 32
        %v1464 = vpop.permute.xlu0 %1463
        %1465 = vrot.lane.b32.xlu0 %v504, 32
        %v1466 = vpop.permute.xlu0 %1465
        %1467 = vrot.lane.b32.xlu0 %v505, 32
        %v1468 = vpop.permute.xlu0 %1467
        %1469 = vrot.lane.b32.xlu0 %v506, 32
        %v1470 = vpop.permute.xlu0 %1469
        %1471 = vrot.lane.b32.xlu0 %v507, 32
        %v1472 = vpop.permute.xlu0 %1471
        %1473 = vrot.lane.b32.xlu0 %v508, 32
        %v1474 = vpop.permute.xlu0 %1473
        %1475 = vrot.lane.b32.xlu0 %v509, 32
        %v1476 = vpop.permute.xlu0 %1475
        %1477 = vrot.lane.b32.xlu0 %v510, 32
        %v1478 = vpop.permute.xlu0 %1477
        %1479 = vrot.lane.b32.xlu0 %v511, 32
        %v1480 = vpop.permute.xlu0 %1479
        %1481 = vrot.lane.b32.xlu0 %v512, 32
        %v1482 = vpop.permute.xlu0 %1481
        %1483 = vrot.lane.b32.xlu0 %v513, 32
        %v1484 = vpop.permute.xlu0 %1483
        %1485 = vrot.lane.b32.xlu0 %v514, 32
        %v1486 = vpop.permute.xlu0 %1485
        %1487 = vrot.lane.b32.xlu0 %v515, 32
        %v1488 = vpop.permute.xlu0 %1487
        %1489 = vrot.lane.b32.xlu0 %v516, 32
        %v1490 = vpop.permute.xlu0 %1489
        %1491 = vrot.lane.b32.xlu0 %v517, 32
        %v1492 = vpop.permute.xlu0 %1491
        %1493 = vrot.lane.b32.xlu0 %v518, 32
        %v1494 = vpop.permute.xlu0 %1493
        %1495 = vrot.lane.b32.xlu0 %v519, 32
        %v1496 = vpop.permute.xlu0 %1495
        %1497 = vrot.lane.b32.xlu0 %v520, 32
        %v1498 = vpop.permute.xlu0 %1497
        %1499 = vrot.lane.b32.xlu0 %v521, 32
        %v1500 = vpop.permute.xlu0 %1499
        %1501 = vrot.lane.b32.xlu0 %v522, 32
        %v1502 = vpop.permute.xlu0 %1501
        %1503 = vrot.lane.b32.xlu0 %v523, 32
        %v1504 = vpop.permute.xlu0 %1503
        %1505 = vrot.lane.b32.xlu0 %v524, 32
        %v1506 = vpop.permute.xlu0 %1505
        %1507 = vrot.lane.b32.xlu0 %v525, 32
        %v1508 = vpop.permute.xlu0 %1507
        %1509 = vrot.lane.b32.xlu0 %v526, 32
        %v1510 = vpop.permute.xlu0 %1509
        %1511 = vrot.lane.b32.xlu0 %v527, 32
        %v1512 = vpop.permute.xlu0 %1511
        %1513 = vrot.lane.b32.xlu0 %v528, 32
        %v1514 = vpop.permute.xlu0 %1513
        %1515 = vrot.lane.b32.xlu0 %v529, 32
        %v1516 = vpop.permute.xlu0 %1515
        %1517 = vrot.lane.b32.xlu0 %v530, 32
        %v1518 = vpop.permute.xlu0 %1517
        %1519 = vrot.lane.b32.xlu0 %v531, 32
        %v1520 = vpop.permute.xlu0 %1519
        %1521 = vrot.lane.b32.xlu0 %v532, 32
        %v1522 = vpop.permute.xlu0 %1521
        %1523 = vrot.lane.b32.xlu0 %v533, 32
        %v1524 = vpop.permute.xlu0 %1523
        %1525 = vrot.lane.b32.xlu0 %v534, 32
        %v1526 = vpop.permute.xlu0 %1525
        %vm1559 = vcmask 31744
        %v1560 = vsel %vm1559, %v241, %v568
        %v1561 = vsel %vm1559, %v242, %v570
        %v1562 = vsel %vm1559, %v243, %v572
        %v1563 = vsel %vm1559, %v244, %v574
        %v1564 = vsel %vm1559, %v245, %v576
        %v1565 = vsel %vm1559, %v246, %v578
        %v1566 = vsel %vm1559, %v247, %v580
        %v1567 = vsel %vm1559, %v248, %v582
        %v1568 = vsel %vm1559, %v249, %v584
        %v1569 = vsel %vm1559, %v250, %v586
        %v1570 = vsel %vm1559, %v251, %v588
        %v1571 = vsel %vm1559, %v252, %v590
        %v1572 = vsel %vm1559, %v253, %v592
        %v1573 = vsel %vm1559, %v254, %v594
        %v1574 = vsel %vm1559, %v255, %v596
        %v1575 = vsel %vm1559, %v256, %v598
        %v1576 = vsel %vm1559, %v257, %v600
        %v1577 = vsel %vm1559, %v258, %v602
        %v1578 = vsel %vm1559, %v259, %v604
        %v1579 = vsel %vm1559, %v260, %v606
        %v1580 = vsel %vm1559, %v261, %v608
        %v1581 = vsel %vm1559, %v262, %v610
        %v1582 = vsel %vm1559, %v263, %v612
        %v1583 = vsel %vm1559, %v264, %v614
        %v1584 = vsel %vm1559, %v265, %v616
        %v1585 = vsel %vm1559, %v266, %v618
        %v1586 = vsel %vm1559, %v267, %v620
        %v1587 = vsel %vm1559, %v268, %v622
        %v1588 = vsel %vm1559, %v269, %v624
        %v1589 = vsel %vm1559, %v270, %v626
        %v1590 = vsel %vm1559, %v271, %v628
        %v1591 = vsel %vm1559, %v272, %v630
        %vm1592 = vcmask 64512
        %v1593 = vsel %vm1592, %v1560, %v696
        %v1594 = vsel %vm1592, %v1561, %v698
        %v1595 = vsel %vm1592, %v1562, %v700
        %v1596 = vsel %vm1592, %v1563, %v702
        %v1597 = vsel %vm1592, %v1564, %v704
        %v1598 = vsel %vm1592, %v1565, %v706
        %v1599 = vsel %vm1592, %v1566, %v708
        %v1600 = vsel %vm1592, %v1567, %v710
        %v1601 = vsel %vm1592, %v1568, %v712
        %v1602 = vsel %vm1592, %v1569, %v714
        %v1603 = vsel %vm1592, %v1570, %v716
        %v1604 = vsel %vm1592, %v1571, %v718
        %v1605 = vsel %vm1592, %v1572, %v720
        %v1606 = vsel %vm1592, %v1573, %v722
        %v1607 = vsel %vm1592, %v1574, %v724
        %v1608 = vsel %vm1592, %v1575, %v726
        %v1609 = vsel %vm1592, %v1576, %v728
        %v1610 = vsel %vm1592, %v1577, %v730
        %v1611 = vsel %vm1592, %v1578, %v732
        %v1612 = vsel %vm1592, %v1579, %v734
        %v1613 = vsel %vm1592, %v1580, %v736
        %v1614 = vsel %vm1592, %v1581, %v738
        %v1615 = vsel %vm1592, %v1582, %v740
        %v1616 = vsel %vm1592, %v1583, %v742
        %v1617 = vsel %vm1592, %v1584, %v744
        %v1618 = vsel %vm1592, %v1585, %v746
        %v1619 = vsel %vm1592, %v1586, %v748
        %v1620 = vsel %vm1592, %v1587, %v750
        %v1621 = vsel %vm1592, %v1588, %v752
        %v1622 = vsel %vm1592, %v1589, %v754
        %v1623 = vsel %vm1592, %v1590, %v756
        %v1624 = vsel %vm1592, %v1591, %v758
        %vm1625 = vcmask 97280
        %v1626 = vsel %vm1625, %v1593, %v824
        %v1627 = vsel %vm1625, %v1594, %v826
        %v1628 = vsel %vm1625, %v1595, %v828
        %v1629 = vsel %vm1625, %v1596, %v830
        %v1630 = vsel %vm1625, %v1597, %v832
        %v1631 = vsel %vm1625, %v1598, %v834
        %v1632 = vsel %vm1625, %v1599, %v836
        %v1633 = vsel %vm1625, %v1600, %v838
        %v1634 = vsel %vm1625, %v1601, %v840
        %v1635 = vsel %vm1625, %v1602, %v842
        %v1636 = vsel %vm1625, %v1603, %v844
        %v1637 = vsel %vm1625, %v1604, %v846
        %v1638 = vsel %vm1625, %v1605, %v848
        %v1639 = vsel %vm1625, %v1606, %v850
        %v1640 = vsel %vm1625, %v1607, %v852
        %v1641 = vsel %vm1625, %v1608, %v854
        %v1642 = vsel %vm1625, %v1609, %v856
        %v1643 = vsel %vm1625, %v1610, %v858
        %v1644 = vsel %vm1625, %v1611, %v860
        %v1645 = vsel %vm1625, %v1612, %v862
        %v1646 = vsel %vm1625, %v1613, %v864
        %v1647 = vsel %vm1625, %v1614, %v866
        %v1648 = vsel %vm1625, %v1615, %v868
        %v1649 = vsel %vm1625, %v1616, %v870
        %v1650 = vsel %vm1625, %v1617, %v872
        %v1651 = vsel %vm1625, %v1618, %v874
        %v1652 = vsel %vm1625, %v1619, %v876
        %v1653 = vsel %vm1625, %v1620, %v878
        %v1654 = vsel %vm1625, %v1621, %v880
        %v1655 = vsel %vm1625, %v1622, %v882
        %v1656 = vsel %vm1625, %v1623, %v884
        %v1657 = vsel %vm1625, %v1624, %v886
        %vm1658 = vcmask 130048
        %v1659 = vsel %vm1658, %v1626, %v952
        %v1660 = vsel %vm1658, %v1627, %v954
        %v1661 = vsel %vm1658, %v1628, %v956
        %v1662 = vsel %vm1658, %v1629, %v958
        %v1663 = vsel %vm1658, %v1630, %v960
        %v1664 = vsel %vm1658, %v1631, %v962
        %v1665 = vsel %vm1658, %v1632, %v964
        %v1666 = vsel %vm1658, %v1633, %v966
        %v1667 = vsel %vm1658, %v1634, %v968
        %v1668 = vsel %vm1658, %v1635, %v970
        %v1669 = vsel %vm1658, %v1636, %v972
        %v1670 = vsel %vm1658, %v1637, %v974
        %v1671 = vsel %vm1658, %v1638, %v976
        %v1672 = vsel %vm1658, %v1639, %v978
        %v1673 = vsel %vm1658, %v1640, %v980
        %v1674 = vsel %vm1658, %v1641, %v982
        %v1675 = vsel %vm1658, %v1642, %v984
        %v1676 = vsel %vm1658, %v1643, %v986
        %v1677 = vsel %vm1658, %v1644, %v988
        %v1678 = vsel %vm1658, %v1645, %v990
        %v1679 = vsel %vm1658, %v1646, %v992
        %v1680 = vsel %vm1658, %v1647, %v994
        %v1681 = vsel %vm1658, %v1648, %v996
        %v1682 = vsel %vm1658, %v1649, %v998
        %v1683 = vsel %vm1658, %v1650, %v1000
        %v1684 = vsel %vm1658, %v1651, %v1002
        %v1685 = vsel %vm1658, %v1652, %v1004
        %v1686 = vsel %vm1658, %v1653, %v1006
        %v1687 = vsel %vm1658, %v1654, %v1008
        %v1688 = vsel %vm1658, %v1655, %v1010
        %v1689 = vsel %vm1658, %v1656, %v1012
        %v1690 = vsel %vm1658, %v1657, %v1014
        %vm1691 = vcmask 162816
        %v1692 = vsel %vm1691, %v1659, %v1080
        %v1693 = vsel %vm1691, %v1660, %v1082
        %v1694 = vsel %vm1691, %v1661, %v1084
        %v1695 = vsel %vm1691, %v1662, %v1086
        %v1696 = vsel %vm1691, %v1663, %v1088
        %v1697 = vsel %vm1691, %v1664, %v1090
        %v1698 = vsel %vm1691, %v1665, %v1092
        %v1699 = vsel %vm1691, %v1666, %v1094
        %v1700 = vsel %vm1691, %v1667, %v1096
        %v1701 = vsel %vm1691, %v1668, %v1098
        %v1702 = vsel %vm1691, %v1669, %v1100
        %v1703 = vsel %vm1691, %v1670, %v1102
        %v1704 = vsel %vm1691, %v1671, %v1104
        %v1705 = vsel %vm1691, %v1672, %v1106
        %v1706 = vsel %vm1691, %v1673, %v1108
        %v1707 = vsel %vm1691, %v1674, %v1110
        %v1708 = vsel %vm1691, %v1675, %v1112
        %v1709 = vsel %vm1691, %v1676, %v1114
        %v1710 = vsel %vm1691, %v1677, %v1116
        %v1711 = vsel %vm1691, %v1678, %v1118
        %v1712 = vsel %vm1691, %v1679, %v1120
        %v1713 = vsel %vm1691, %v1680, %v1122
        %v1714 = vsel %vm1691, %v1681, %v1124
        %v1715 = vsel %vm1691, %v1682, %v1126
        %v1716 = vsel %vm1691, %v1683, %v1128
        %v1717 = vsel %vm1691, %v1684, %v1130
        %v1718 = vsel %vm1691, %v1685, %v1132
        %v1719 = vsel %vm1691, %v1686, %v1134
        %v1720 = vsel %vm1691, %v1687, %v1136
        %v1721 = vsel %vm1691, %v1688, %v1138
        %v1722 = vsel %vm1691, %v1689, %v1140
        %v1723 = vsel %vm1691, %v1690, %v1142
        %vm1724 = vcmask 195584
        %v1725 = vsel %vm1724, %v1692, %v1208
        %v1726 = vsel %vm1724, %v1693, %v1210
        %v1727 = vsel %vm1724, %v1694, %v1212
        %v1728 = vsel %vm1724, %v1695, %v1214
        %v1729 = vsel %vm1724, %v1696, %v1216
        %v1730 = vsel %vm1724, %v1697, %v1218
        %v1731 = vsel %vm1724, %v1698, %v1220
        %v1732 = vsel %vm1724, %v1699, %v1222
        %v1733 = vsel %vm1724, %v1700, %v1224
        %v1734 = vsel %vm1724, %v1701, %v1226
        %v1735 = vsel %vm1724, %v1702, %v1228
        %v1736 = vsel %vm1724, %v1703, %v1230
        %v1737 = vsel %vm1724, %v1704, %v1232
        %v1738 = vsel %vm1724, %v1705, %v1234
        %v1739 = vsel %vm1724, %v1706, %v1236
        %v1740 = vsel %vm1724, %v1707, %v1238
        %v1741 = vsel %vm1724, %v1708, %v1240
        %v1742 = vsel %vm1724, %v1709, %v1242
        %v1743 = vsel %vm1724, %v1710, %v1244
        %v1744 = vsel %vm1724, %v1711, %v1246
        %v1745 = vsel %vm1724, %v1712, %v1248
        %v1746 = vsel %vm1724, %v1713, %v1250
        %v1747 = vsel %vm1724, %v1714, %v1252
        %v1748 = vsel %vm1724, %v1715, %v1254
        %v1749 = vsel %vm1724, %v1716, %v1256
        %v1750 = vsel %vm1724, %v1717, %v1258
        %v1751 = vsel %vm1724, %v1718, %v1260
        %v1752 = vsel %vm1724, %v1719, %v1262
        %v1753 = vsel %vm1724, %v1720, %v1264
        %v1754 = vsel %vm1724, %v1721, %v1266
        %v1755 = vsel %vm1724, %v1722, %v1268
        %v1756 = vsel %vm1724, %v1723, %v1270
        %vm1757 = vcmask 228352
        %v1758 = vsel %vm1757, %v1725, %v1336
        %v1759 = vsel %vm1757, %v1726, %v1338
        %v1760 = vsel %vm1757, %v1727, %v1340
        %v1761 = vsel %vm1757, %v1728, %v1342
        %v1762 = vsel %vm1757, %v1729, %v1344
        %v1763 = vsel %vm1757, %v1730, %v1346
        %v1764 = vsel %vm1757, %v1731, %v1348
        %v1765 = vsel %vm1757, %v1732, %v1350
        %v1766 = vsel %vm1757, %v1733, %v1352
        %v1767 = vsel %vm1757, %v1734, %v1354
        %v1768 = vsel %vm1757, %v1735, %v1356
        %v1769 = vsel %vm1757, %v1736, %v1358
        %v1770 = vsel %vm1757, %v1737, %v1360
        %v1771 = vsel %vm1757, %v1738, %v1362
        %v1772 = vsel %vm1757, %v1739, %v1364
        %v1773 = vsel %vm1757, %v1740, %v1366
        %v1774 = vsel %vm1757, %v1741, %v1368
        %v1775 = vsel %vm1757, %v1742, %v1370
        %v1776 = vsel %vm1757, %v1743, %v1372
        %v1777 = vsel %vm1757, %v1744, %v1374
        %v1778 = vsel %vm1757, %v1745, %v1376
        %v1779 = vsel %vm1757, %v1746, %v1378
        %v1780 = vsel %vm1757, %v1747, %v1380
        %v1781 = vsel %vm1757, %v1748, %v1382
        %v1782 = vsel %vm1757, %v1749, %v1384
        %v1783 = vsel %vm1757, %v1750, %v1386
        %v1784 = vsel %vm1757, %v1751, %v1388
        %v1785 = vsel %vm1757, %v1752, %v1390
        %v1786 = vsel %vm1757, %v1753, %v1392
        %v1787 = vsel %vm1757, %v1754, %v1394
        %v1788 = vsel %vm1757, %v1755, %v1396
        %v1789 = vsel %vm1757, %v1756, %v1398
        %vm1790 = vcmask 261120
        %v1791 = vsel %vm1790, %v1758, %v1464
        %v1792 = vsel %vm1790, %v1759, %v1466
        %v1793 = vsel %vm1790, %v1760, %v1468
        %v1794 = vsel %vm1790, %v1761, %v1470
        %v1795 = vsel %vm1790, %v1762, %v1472
        %v1796 = vsel %vm1790, %v1763, %v1474
        %v1797 = vsel %vm1790, %v1764, %v1476
        %v1798 = vsel %vm1790, %v1765, %v1478
        %v1799 = vsel %vm1790, %v1766, %v1480
        %v1800 = vsel %vm1790, %v1767, %v1482
        %v1801 = vsel %vm1790, %v1768, %v1484
        %v1802 = vsel %vm1790, %v1769, %v1486
        %v1803 = vsel %vm1790, %v1770, %v1488
        %v1804 = vsel %vm1790, %v1771, %v1490
        %v1805 = vsel %vm1790, %v1772, %v1492
        %v1806 = vsel %vm1790, %v1773, %v1494
        %v1807 = vsel %vm1790, %v1774, %v1496
        %v1808 = vsel %vm1790, %v1775, %v1498
        %v1809 = vsel %vm1790, %v1776, %v1500
        %v1810 = vsel %vm1790, %v1777, %v1502
        %v1811 = vsel %vm1790, %v1778, %v1504
        %v1812 = vsel %vm1790, %v1779, %v1506
        %v1813 = vsel %vm1790, %v1780, %v1508
        %v1814 = vsel %vm1790, %v1781, %v1510
        %v1815 = vsel %vm1790, %v1782, %v1512
        %v1816 = vsel %vm1790, %v1783, %v1514
        %v1817 = vsel %vm1790, %v1784, %v1516
        %v1818 = vsel %vm1790, %v1785, %v1518
        %v1819 = vsel %vm1790, %v1786, %v1520
        %v1820 = vsel %vm1790, %v1787, %v1522
        %v1821 = vsel %vm1790, %v1788, %v1524
        %v1822 = vsel %vm1790, %v1789, %v1526
        %v1823 = vld [vmem:[%s1] sm:$0xff]
        %v1824 = vld [vmem:[%s1 + $0x8] sm:$0xff]
        %v1825 = vld [vmem:[%s1 + $0x10] sm:$0xff]
        %v1826 = vld [vmem:[%s1 + $0x18] sm:$0xff]
        %v1827 = vld [vmem:[%s1 + $0x20] sm:$0xf]
        %v1828 = vld [vmem:[%s2] sm:$0x1]
        %v1830 = vperm.slane %v1828, 0
        %vm1832 = vcmask 293888
        %v1834 = vsel %vm1832, %v1791, 0
        %v1837 = vsel %vm1832, %v1792, 0
        %v1840 = vsel %vm1832, %v1793, 0
        %v1843 = vsel %vm1832, %v1794, 0
        %v1846 = vsel %vm1832, %v1795, 0
        %v1849 = vsel %vm1832, %v1796, 0
        %v1852 = vsel %vm1832, %v1797, 0
        %v1855 = vsel %vm1832, %v1798, 0
        %v1858 = vsel %vm1832, %v1799, 0
        %v1861 = vsel %vm1832, %v1800, 0
        %v1864 = vsel %vm1832, %v1801, 0
        %v1867 = vsel %vm1832, %v1802, 0
        %v1870 = vsel %vm1832, %v1803, 0
        %v1873 = vsel %vm1832, %v1804, 0
        %v1876 = vsel %vm1832, %v1805, 0
        %v1879 = vsel %vm1832, %v1806, 0
        %v1882 = vsel %vm1832, %v1807, 0
        %v1885 = vsel %vm1832, %v1808, 0
        %v1888 = vsel %vm1832, %v1809, 0
        %v1891 = vsel %vm1832, %v1810, 0
        %v1894 = vsel %vm1832, %v1811, 0
        %v1897 = vsel %vm1832, %v1812, 0
        %v1900 = vsel %vm1832, %v1813, 0
        %v1903 = vsel %vm1832, %v1814, 0
        %v1906 = vsel %vm1832, %v1815, 0
        %v1909 = vsel %vm1832, %v1816, 0
        %v1912 = vsel %vm1832, %v1817, 0
        %v1915 = vsel %vm1832, %v1818, 0
        %v1918 = vsel %vm1832, %v1819, 0
        %v1921 = vsel %vm1832, %v1820, 0
        %v1924 = vsel %vm1832, %v1821, 0
        %v1927 = vsel %vm1832, %v1822, 0
        %vm1929 = vcmask 1043456
        %v1931 = vsel %vm1929, %v1827, 0
        %1933 = vmatpush.msra.mxu0 0.0
        %1934 = vmatpush.msra.mxu0 0.0
        %1935 = vmatpush.msra.mxu0 0.0
        %1936 = vmatpush.msra.mxu0 0.0
        %1937 = vmatpush.msra.mxu0 0.0
        %1938 = vmatpush.msra.mxu0 0.0
        %1939 = vmatpush.msra.mxu0 0.0
        %1940 = vmatpush.msra.mxu0 0.0
        %1941 = vmatpush.msra.mxu0 0.0
        %1942 = vmatpush.msra.mxu0 0.0
        %1943 = vmatpush.msra.mxu0 0.0
        %1944 = vmatpush.msra.mxu0 %v1931
        %1945 = vmatpush.msra.mxu0 %v1826
        %1946 = vmatpush.msra.mxu0 %v1825
        %1947 = vmatpush.msra.mxu0 %v1824
        %1948 = vmatpush.msra.mxu0 %v1823
        %1949 = vmatmul.f32.gmra.mxu0 %v1834
        %v1950 = vpop.f32.mrf.mxu0
        %v1951 = vadd.f32 %v1830, %v1950
        %1952 = vmatmul.f32.gmra.mxu0 %v1837
        %v1953 = vpop.f32.mrf.mxu0
        %v1954 = vadd.f32 %v1830, %v1953
        %1955 = vmatmul.f32.gmra.mxu0 %v1840
        %v1956 = vpop.f32.mrf.mxu0
        %v1957 = vadd.f32 %v1830, %v1956
        %1958 = vmatmul.f32.gmra.mxu0 %v1843
        %v1959 = vpop.f32.mrf.mxu0
        %v1960 = vadd.f32 %v1830, %v1959
        %1961 = vmatmul.f32.gmra.mxu0 %v1846
        %v1962 = vpop.f32.mrf.mxu0
        %v1963 = vadd.f32 %v1830, %v1962
        %1964 = vmatmul.f32.gmra.mxu0 %v1849
        %v1965 = vpop.f32.mrf.mxu0
        %v1966 = vadd.f32 %v1830, %v1965
        %1967 = vmatmul.f32.gmra.mxu0 %v1852
        %v1968 = vpop.f32.mrf.mxu0
        %v1969 = vadd.f32 %v1830, %v1968
        %1970 = vmatmul.f32.gmra.mxu0 %v1855
        %v1971 = vpop.f32.mrf.mxu0
        %v1972 = vadd.f32 %v1830, %v1971
        %1973 = vmatmul.f32.gmra.mxu0 %v1858
        %v1974 = vpop.f32.mrf.mxu0
        %v1975 = vadd.f32 %v1830, %v1974
        %1976 = vmatmul.f32.gmra.mxu0 %v1861
        %v1977 = vpop.f32.mrf.mxu0
        %v1978 = vadd.f32 %v1830, %v1977
        %1979 = vmatmul.f32.gmra.mxu0 %v1864
        %v1980 = vpop.f32.mrf.mxu0
        %v1981 = vadd.f32 %v1830, %v1980
        %1982 = vmatmul.f32.gmra.mxu0 %v1867
        %v1983 = vpop.f32.mrf.mxu0
        %v1984 = vadd.f32 %v1830, %v1983
        %1985 = vmatmul.f32.gmra.mxu0 %v1870
        %v1986 = vpop.f32.mrf.mxu0
        %v1987 = vadd.f32 %v1830, %v1986
        %1988 = vmatmul.f32.gmra.mxu0 %v1873
        %v1989 = vpop.f32.mrf.mxu0
        %v1990 = vadd.f32 %v1830, %v1989
        %1991 = vmatmul.f32.gmra.mxu0 %v1876
        %v1992 = vpop.f32.mrf.mxu0
        %v1993 = vadd.f32 %v1830, %v1992
        %1994 = vmatmul.f32.gmra.mxu0 %v1879
        %v1995 = vpop.f32.mrf.mxu0
        %v1996 = vadd.f32 %v1830, %v1995
        %1997 = vmatmul.f32.gmra.mxu0 %v1882
        %v1998 = vpop.f32.mrf.mxu0
        %v1999 = vadd.f32 %v1830, %v1998
        %2000 = vmatmul.f32.gmra.mxu0 %v1885
        %v2001 = vpop.f32.mrf.mxu0
        %v2002 = vadd.f32 %v1830, %v2001
        %2003 = vmatmul.f32.gmra.mxu0 %v1888
        %v2004 = vpop.f32.mrf.mxu0
        %v2005 = vadd.f32 %v1830, %v2004
        %2006 = vmatmul.f32.gmra.mxu0 %v1891
        %v2007 = vpop.f32.mrf.mxu0
        %v2008 = vadd.f32 %v1830, %v2007
        %2009 = vmatmul.f32.gmra.mxu0 %v1894
        %v2010 = vpop.f32.mrf.mxu0
        %v2011 = vadd.f32 %v1830, %v2010
        %2012 = vmatmul.f32.gmra.mxu0 %v1897
        %v2013 = vpop.f32.mrf.mxu0
        %v2014 = vadd.f32 %v1830, %v2013
        %2015 = vmatmul.f32.gmra.mxu0 %v1900
        %v2016 = vpop.f32.mrf.mxu0
        %v2017 = vadd.f32 %v1830, %v2016
        %2018 = vmatmul.f32.gmra.mxu0 %v1903
        %v2019 = vpop.f32.mrf.mxu0
        %v2020 = vadd.f32 %v1830, %v2019
        %2021 = vmatmul.f32.gmra.mxu0 %v1906
        %v2022 = vpop.f32.mrf.mxu0
        %v2023 = vadd.f32 %v1830, %v2022
        %2024 = vmatmul.f32.gmra.mxu0 %v1909
        %v2025 = vpop.f32.mrf.mxu0
        %v2026 = vadd.f32 %v1830, %v2025
        %2027 = vmatmul.f32.gmra.mxu0 %v1912
        %v2028 = vpop.f32.mrf.mxu0
        %v2029 = vadd.f32 %v1830, %v2028
        %2030 = vmatmul.f32.gmra.mxu0 %v1915
        %v2031 = vpop.f32.mrf.mxu0
        %v2032 = vadd.f32 %v1830, %v2031
        %2033 = vmatmul.f32.gmra.mxu0 %v1918
        %v2034 = vpop.f32.mrf.mxu0
        %v2035 = vadd.f32 %v1830, %v2034
        %2036 = vmatmul.f32.gmra.mxu0 %v1921
        %v2037 = vpop.f32.mrf.mxu0
        %v2038 = vadd.f32 %v1830, %v2037
        %2039 = vmatmul.f32.gmra.mxu0 %v1924
        %v2040 = vpop.f32.mrf.mxu0
        %v2041 = vadd.f32 %v1830, %v2040
        %2042 = vmatmul.f32.gmra.mxu0 %v1927
        %v2043 = vpop.f32.mrf.mxu0
        %v2044 = vadd.f32 %v1830, %v2043
        %2045 = vdwg.mxu0
        %v2046 = vmax.f32 %v1951, 0.0
        %v2047 = vmax.f32 %v1954, 0.0
        %v2048 = vmax.f32 %v1957, 0.0
        %v2049 = vmax.f32 %v1960, 0.0
        %v2050 = vmax.f32 %v1963, 0.0
        %v2051 = vmax.f32 %v1966, 0.0
        %v2052 = vmax.f32 %v1969, 0.0
        %v2053 = vmax.f32 %v1972, 0.0
        %v2054 = vmax.f32 %v1975, 0.0
        %v2055 = vmax.f32 %v1978, 0.0
        %v2056 = vmax.f32 %v1981, 0.0
        %v2057 = vmax.f32 %v1984, 0.0
        %v2058 = vmax.f32 %v1987, 0.0
        %v2059 = vmax.f32 %v1990, 0.0
        %v2060 = vmax.f32 %v1993, 0.0
        %v2061 = vmax.f32 %v1996, 0.0
        %v2062 = vmax.f32 %v1999, 0.0
        %v2063 = vmax.f32 %v2002, 0.0
        %v2064 = vmax.f32 %v2005, 0.0
        %v2065 = vmax.f32 %v2008, 0.0
        %v2066 = vmax.f32 %v2011, 0.0
        %v2067 = vmax.f32 %v2014, 0.0
        %v2068 = vmax.f32 %v2017, 0.0
        %v2069 = vmax.f32 %v2020, 0.0
        %v2070 = vmax.f32 %v2023, 0.0
        %v2071 = vmax.f32 %v2026, 0.0
        %v2072 = vmax.f32 %v2029, 0.0
        %v2073 = vmax.f32 %v2032, 0.0
        %v2074 = vmax.f32 %v2035, 0.0
        %v2075 = vmax.f32 %v2038, 0.0
        %v2076 = vmax.f32 %v2041, 0.0
        %v2077 = vmax.f32 %v2044, 0.0
        %v2078 = vld [vmem:[%s3] sm:$0xff]
        %v2079 = vld [vmem:[%s3 + $0x8] sm:$0xff]
        %v2080 = vld [vmem:[%s3 + $0x10] sm:$0xff]
        %v2081 = vld [vmem:[%s3 + $0x18] sm:$0xff]
        %v2082 = vld [vmem:[%s3 + $0x20] sm:$0xff]
        %v2083 = vld [vmem:[%s3 + $0x28] sm:$0xff]
        %v2084 = vld [vmem:[%s3 + $0x30] sm:$0xff]
        %v2085 = vld [vmem:[%s3 + $0x38] sm:$0xff]
        %v2086 = vld [vmem:[%s3 + $0x40] sm:$0xff]
        %v2087 = vld [vmem:[%s3 + $0x48] sm:$0xff]
        %v2088 = vld [vmem:[%s3 + $0x50] sm:$0xff]
        %v2089 = vld [vmem:[%s3 + $0x58] sm:$0xff]
        %v2090 = vld [vmem:[%s3 + $0x60] sm:$0xff]
        %v2091 = vld [vmem:[%s3 + $0x68] sm:$0xff]
        %v2092 = vld [vmem:[%s3 + $0x70] sm:$0xff]
        %v2093 = vld [vmem:[%s3 + $0x78] sm:$0xff]
        %v2094 = vld [vmem:[%s4] sm:$0x1]
        %v2096 = vperm.slane %v2094, 0
        %2098 = vmatpush.msra.mxu0 %v2093
        %2099 = vmatpush.msra.mxu0 %v2092
        %2100 = vmatpush.msra.mxu0 %v2091
        %2101 = vmatpush.msra.mxu0 %v2090
        %2102 = vmatpush.msra.mxu0 %v2089
        %2103 = vmatpush.msra.mxu0 %v2088
        %2104 = vmatpush.msra.mxu0 %v2087
        %2105 = vmatpush.msra.mxu0 %v2086
        %2106 = vmatpush.msra.mxu0 %v2085
        %2107 = vmatpush.msra.mxu0 %v2084
        %2108 = vmatpush.msra.mxu0 %v2083
        %2109 = vmatpush.msra.mxu0 %v2082
        %2110 = vmatpush.msra.mxu0 %v2081
        %2111 = vmatpush.msra.mxu0 %v2080
        %2112 = vmatpush.msra.mxu0 %v2079
        %2113 = vmatpush.msra.mxu0 %v2078
        %2114 = vmatmul.f32.gmra.mxu0 %v2046
        %v2115 = vpop.f32.mrf.mxu0
        %v2116 = vadd.f32 %v2096, %v2115
        %2117 = vmatmul.f32.gmra.mxu0 %v2047
        %v2118 = vpop.f32.mrf.mxu0
        %v2119 = vadd.f32 %v2096, %v2118
        %2120 = vmatmul.f32.gmra.mxu0 %v2048
        %v2121 = vpop.f32.mrf.mxu0
        %v2122 = vadd.f32 %v2096, %v2121
        %2123 = vmatmul.f32.gmra.mxu0 %v2049
        %v2124 = vpop.f32.mrf.mxu0
        %v2125 = vadd.f32 %v2096, %v2124
        %2126 = vmatmul.f32.gmra.mxu0 %v2050
        %v2127 = vpop.f32.mrf.mxu0
        %v2128 = vadd.f32 %v2096, %v2127
        %2129 = vmatmul.f32.gmra.mxu0 %v2051
        %v2130 = vpop.f32.mrf.mxu0
        %v2131 = vadd.f32 %v2096, %v2130
        %2132 = vmatmul.f32.gmra.mxu0 %v2052
        %v2133 = vpop.f32.mrf.mxu0
        %v2134 = vadd.f32 %v2096, %v2133
        %2135 = vmatmul.f32.gmra.mxu0 %v2053
        %v2136 = vpop.f32.mrf.mxu0
        %v2137 = vadd.f32 %v2096, %v2136
        %2138 = vmatmul.f32.gmra.mxu0 %v2054
        %v2139 = vpop.f32.mrf.mxu0
        %v2140 = vadd.f32 %v2096, %v2139
        %2141 = vmatmul.f32.gmra.mxu0 %v2055
        %v2142 = vpop.f32.mrf.mxu0
        %v2143 = vadd.f32 %v2096, %v2142
        %2144 = vmatmul.f32.gmra.mxu0 %v2056
        %v2145 = vpop.f32.mrf.mxu0
        %v2146 = vadd.f32 %v2096, %v2145
        %2147 = vmatmul.f32.gmra.mxu0 %v2057
        %v2148 = vpop.f32.mrf.mxu0
        %v2149 = vadd.f32 %v2096, %v2148
        %2150 = vmatmul.f32.gmra.mxu0 %v2058
        %v2151 = vpop.f32.mrf.mxu0
        %v2152 = vadd.f32 %v2096, %v2151
        %2153 = vmatmul.f32.gmra.mxu0 %v2059
        %v2154 = vpop.f32.mrf.mxu0
        %v2155 = vadd.f32 %v2096, %v2154
        %2156 = vmatmul.f32.gmra.mxu0 %v2060
        %v2157 = vpop.f32.mrf.mxu0
        %v2158 = vadd.f32 %v2096, %v2157
        %2159 = vmatmul.f32.gmra.mxu0 %v2061
        %v2160 = vpop.f32.mrf.mxu0
        %v2161 = vadd.f32 %v2096, %v2160
        %2162 = vmatmul.f32.gmra.mxu0 %v2062
        %v2163 = vpop.f32.mrf.mxu0
        %v2164 = vadd.f32 %v2096, %v2163
        %2165 = vmatmul.f32.gmra.mxu0 %v2063
        %v2166 = vpop.f32.mrf.mxu0
        %v2167 = vadd.f32 %v2096, %v2166
        %2168 = vmatmul.f32.gmra.mxu0 %v2064
        %v2169 = vpop.f32.mrf.mxu0
        %v2170 = vadd.f32 %v2096, %v2169
        %2171 = vmatmul.f32.gmra.mxu0 %v2065
        %v2172 = vpop.f32.mrf.mxu0
        %v2173 = vadd.f32 %v2096, %v2172
        %2174 = vmatmul.f32.gmra.mxu0 %v2066
        %v2175 = vpop.f32.mrf.mxu0
        %v2176 = vadd.f32 %v2096, %v2175
        %2177 = vmatmul.f32.gmra.mxu0 %v2067
        %v2178 = vpop.f32.mrf.mxu0
        %v2179 = vadd.f32 %v2096, %v2178
        %2180 = vmatmul.f32.gmra.mxu0 %v2068
        %v2181 = vpop.f32.mrf.mxu0
        %v2182 = vadd.f32 %v2096, %v2181
        %2183 = vmatmul.f32.gmra.mxu0 %v2069
        %v2184 = vpop.f32.mrf.mxu0
        %v2185 = vadd.f32 %v2096, %v2184
        %2186 = vmatmul.f32.gmra.mxu0 %v2070
        %v2187 = vpop.f32.mrf.mxu0
        %v2188 = vadd.f32 %v2096, %v2187
        %2189 = vmatmul.f32.gmra.mxu0 %v2071
        %v2190 = vpop.f32.mrf.mxu0
        %v2191 = vadd.f32 %v2096, %v2190
        %2192 = vmatmul.f32.gmra.mxu0 %v2072
        %v2193 = vpop.f32.mrf.mxu0
        %v2194 = vadd.f32 %v2096, %v2193
        %2195 = vmatmul.f32.gmra.mxu0 %v2073
        %v2196 = vpop.f32.mrf.mxu0
        %v2197 = vadd.f32 %v2096, %v2196
        %2198 = vmatmul.f32.gmra.mxu0 %v2074
        %v2199 = vpop.f32.mrf.mxu0
        %v2200 = vadd.f32 %v2096, %v2199
        %2201 = vmatmul.f32.gmra.mxu0 %v2075
        %v2202 = vpop.f32.mrf.mxu0
        %v2203 = vadd.f32 %v2096, %v2202
        %2204 = vmatmul.f32.gmra.mxu0 %v2076
        %v2205 = vpop.f32.mrf.mxu0
        %v2206 = vadd.f32 %v2096, %v2205
        %2207 = vmatmul.f32.gmra.mxu0 %v2077
        %v2208 = vpop.f32.mrf.mxu0
        %v2209 = vadd.f32 %v2096, %v2208
        %2210 = vdwg.mxu0
        %2211 = vst [vmem:[%s231] sm:$0xff] %v2116
        %2212 = vst [vmem:[%s231 + $0x8] sm:$0xff] %v2119
        %2213 = vst [vmem:[%s231 + $0x10] sm:$0xff] %v2122
        %2214 = vst [vmem:[%s231 + $0x18] sm:$0xff] %v2125
        %2215 = vst [vmem:[%s231 + $0x20] sm:$0xff] %v2128
        %2216 = vst [vmem:[%s231 + $0x28] sm:$0xff] %v2131
        %2217 = vst [vmem:[%s231 + $0x30] sm:$0xff] %v2134
        %2218 = vst [vmem:[%s231 + $0x38] sm:$0xff] %v2137
        %2219 = vst [vmem:[%s231 + $0x40] sm:$0xff] %v2140
        %2220 = vst [vmem:[%s231 + $0x48] sm:$0xff] %v2143
        %2221 = vst [vmem:[%s231 + $0x50] sm:$0xff] %v2146
        %2222 = vst [vmem:[%s231 + $0x58] sm:$0xff] %v2149
        %2223 = vst [vmem:[%s231 + $0x60] sm:$0xff] %v2152
        %2224 = vst [vmem:[%s231 + $0x68] sm:$0xff] %v2155
        %2225 = vst [vmem:[%s231 + $0x70] sm:$0xff] %v2158
        %2226 = vst [vmem:[%s231 + $0x78] sm:$0xff] %v2161
        %2227 = vst [vmem:[%s231 + $0x80] sm:$0xff] %v2164
        %2228 = vst [vmem:[%s231 + $0x88] sm:$0xff] %v2167
        %2229 = vst [vmem:[%s231 + $0x90] sm:$0xff] %v2170
        %2230 = vst [vmem:[%s231 + $0x98] sm:$0xff] %v2173
        %2231 = vst [vmem:[%s231 + $0xa0] sm:$0xff] %v2176
        %2232 = vst [vmem:[%s231 + $0xa8] sm:$0xff] %v2179
        %2233 = vst [vmem:[%s231 + $0xb0] sm:$0xff] %v2182
        %2234 = vst [vmem:[%s231 + $0xb8] sm:$0xff] %v2185
        %2235 = vst [vmem:[%s231 + $0xc0] sm:$0xff] %v2188
        %2236 = vst [vmem:[%s231 + $0xc8] sm:$0xff] %v2191
        %2237 = vst [vmem:[%s231 + $0xd0] sm:$0xff] %v2194
        %2238 = vst [vmem:[%s231 + $0xd8] sm:$0xff] %v2197
        %2239 = vst [vmem:[%s231 + $0xe0] sm:$0xff] %v2200
        %2240 = vst [vmem:[%s231 + $0xe8] sm:$0xff] %v2203
        %2241 = vst [vmem:[%s231 + $0xf0] sm:$0xff] %v2206
        %2242 = vst [vmem:[%s231 + $0xf8] sm:$0xff] %v2209
        %s2243 = sand.u32 %s151, 1
        %s2244 = scalar_lea.sflag [#allocation3], %s2243
        %s2245 = sand.u32 %s151, 1
        %s2246 = smul.addr %s2245, 256
        %s2247 = scalar_lea.vmem [#allocation2], %s2246
        // Predicated region
        $region41: #{tpu_custom_call.1} parent=39 // pred_check
          %p2248 = pneg %p161
        $region42: #{tpu_custom_call.1} parent=39 // pred_check_branch
          %2250 = sbr.rel (%p2248) target = $region44
        $region43: #{tpu_custom_call.1} parent=39 // pred_region
          %s2251 = smul.u32 16, %s24
          %2253 = vsyncadd %s2244, 0
          %s2254 = smul.addr %s2251, 2
          %s2255 = smul.addr %s23, 32
          %s2256 = sadd.s32 %s2254, %s2255
          %s2257 = smul.addr %s2256, 8
          %s2258 = scalar_lea.hbm %s5, %s2257
          %s2259 = sshll.u32 %s2247, 4
          %s2260 = int_to_ptr.vmem [resolvable:$true] %s2259
          %s2261 = sshll.u32 %s2258, 4
          %s2262 = int_to_ptr.hbm [resolvable:$true] %s2261
          %2267 = dma.vmem_to_hbm [thread:$0]  %s2260, 4096, %s2262, %s2244, 128, 128, 8
        $region44: #{tpu_custom_call.1} parent=39 // pred_fallthru
          _
      $region40: #{tpu_custom_call.1} parent=5 // pred_fallthru
        _
      %p2268 = scmp.le.s32.totalorder 2, %s14
      // Predicated region
      $region45: #{tpu_custom_call.1} parent=5 // pred_check
        %p2269 = pneg %p2268
      $region46: #{tpu_custom_call.1} parent=5 // pred_check_branch
        %2271 = sbr.rel (%p2269) target = $region48
      $region47: #{tpu_custom_call.1} parent=5 // pred_region
        %s2272 = ssub.s32 %s14, 2
        // Predicated region
        $region49: #{tpu_custom_call.1} parent=47 // pred_check
          %p2273 = pneg %p167
        $region50: #{tpu_custom_call.1} parent=47 // pred_check_branch
          %2275 = sbr.rel (%p2273) target = $region52
        $region51: #{tpu_custom_call.1} parent=47 // pred_region
          %s2276 = sand.u32 %s152, 1
          %s2277 = scalar_lea.sflag [#allocation3], %s2276
          %s2278 = sand.u32 %s152, 1
          %s2279 = smul.addr %s2278, 256
          %s2280 = scalar_lea.vmem [#allocation2], %s2279
          %2282 = dma.done %s2277, 4096
        $region52: #{tpu_custom_call.1} parent=47 // pred_fallthru
          _
      $region48: #{tpu_custom_call.1} parent=5 // pred_fallthru
        _
    $region6: #{tpu_custom_call.1} parent=1 // loop_footer
      %s18 = sadd.s32 1, %s14
    $region7: #{tpu_custom_call.1} parent=1 // loop_footer_branch
      %13 = sbr.rel target = $region3
    $region8: #{tpu_custom_call.1} parent=1 // loop_exit
      _
    %2283 = vsyncpa [#allocation3], 1
    %s2284 = scalar_lea.sflag [#allocation3], 1
    %2285 = vsyncpa %s2284, 1

</llo_original>
